<compile_context>
chip_gen: v7x
topology: tpu7x:2x2x1
jax: 0.10.0
libtpu: 0.0.40
codegen_flags: <defaults>
</compile_context>

<pallas_src>
import jax
import jax.numpy as jnp
from jax import lax
from jax.experimental import pallas as pl
from jax.experimental.pallas import tpu as pltpu


LANE = 128  # lane width; small feature dims are zero-padded up to this


def _round_up(v, m):
    return ((v + m - 1) // m) * m


def _pick_tile(n, target):
    """Largest tile <= target that divides n (halving until it divides)."""
    t = min(n, target)
    while n % t != 0:
        t //= 2
    return max(t, 1)


# ---------------------------------------------------------------------------
# Kernels
# ---------------------------------------------------------------------------
def dense_kernel(x_ref, w_ref, s_ref):
    # s = x @ W1   (row tile of x; W1 resident in VMEM across the grid)
    s_ref[...] = jnp.dot(
        x_ref[...], w_ref[...], preferred_element_type=jnp.float32
    ).astype(s_ref.dtype)


def conv1_kernel(adj_ref, s1_ref, b1_ref, w2_ref, s2_ref, acc_ref):
    # Accumulate adj_tile @ s1 over the contraction (k) grid axis, then
    # finalize:  s2_tile = relu(acc + b1) @ W2  (layer-2 dense fused here).
    k = pl.program_id(1)

    @pl.when(k == 0)
    def _():
        acc_ref[...] = jnp.zeros_like(acc_ref)

    # adj arrives as f32 from HBM; cast to bf16 just before the MXU.
    acc_ref[...] += jnp.dot(
        adj_ref[...].astype(jnp.bfloat16), s1_ref[...],
        preferred_element_type=jnp.float32,
    )

    @pl.when(k == pl.num_programs(1) - 1)
    def _():
        h1 = jnp.maximum(acc_ref[...] + b1_ref[...], 0.0)          # f32 relu
        s2_ref[...] = jnp.dot(
            h1.astype(jnp.bfloat16), w2_ref[...],
            preferred_element_type=jnp.float32,
        ).astype(s2_ref.dtype)


def conv2_kernel(adj_ref, s2_ref, b2_ref, z_ref, acc_ref):
    # z_tile = adj_tile @ s2 + b2  (accumulated over the k grid axis).
    k = pl.program_id(1)

    @pl.when(k == 0)
    def _():
        acc_ref[...] = jnp.zeros_like(acc_ref)

    acc_ref[...] += jnp.dot(
        adj_ref[...].astype(jnp.bfloat16), s2_ref[...],
        preferred_element_type=jnp.float32,
    )

    @pl.when(k == pl.num_programs(1) - 1)
    def _():
        z_ref[...] = (acc_ref[...] + b2_ref[...]).astype(z_ref.dtype)


def decoder_kernel(zi_ref, zj_ref, out_ref):
    # out_tile = sigmoid(z_i @ z_j^T) without materializing z.T (NT matmul).
    logits = lax.dot_general(
        zi_ref[...], zj_ref[...],
        dimension_numbers=(((1,), (1,)), ((), ())),
        preferred_element_type=jnp.float32,
    )
    out_ref[...] = jax.nn.sigmoid(logits).astype(out_ref.dtype)


# ---------------------------------------------------------------------------
# Wrapper
# ---------------------------------------------------------------------------
def graph_autoencoder_forward(x, adj, w1, b1, w2, b2):
    n, nfeat = x.shape
    nhid = w1.shape[1]
    nclass = w2.shape[1]

    hpad = _round_up(nhid, LANE)
    cpad = _round_up(nclass, LANE)

    # bf16 MXU inputs (f32 accumulation inside kernels); biases stay f32.
    # adj stays f32 in HBM and is cast to bf16 in-kernel (see kernels above).
    xb = x.astype(jnp.bfloat16)
    w1p = jnp.pad(w1, ((0, 0), (0, hpad - nhid))).astype(jnp.bfloat16)
    b1p = jnp.pad(jnp.reshape(b1, (1, nhid)), ((0, 0), (0, hpad - nhid)))
    w2p = jnp.pad(
        w2, ((0, hpad - nhid), (0, cpad - nclass))
    ).astype(jnp.bfloat16)
    b2p = jnp.pad(jnp.reshape(b2, (1, nclass)), ((0, 0), (0, cpad - nclass)))

    # Tile sizes: large enough to amortize per-grid-step overhead, small
    # enough to fit a 32 MiB VMEM budget (v7x-safe) with double-buffering,
    # and lane-dense (multiples of 128) output stores.
    tm = _pick_tile(n, 512)     # conv output row tile
    tk = _pick_tile(n, 1024)    # adj contraction (column) tile
    tdm = _pick_tile(n, 512)    # decoder output rows
    tdn = _pick_tile(n, 1024)   # decoder output cols (lane-dense)

    conv_params = pltpu.CompilerParams(
        dimension_semantics=("parallel", "arbitrary"),
        vmem_limit_bytes=32 * 1024 * 1024,
    )

    # --- layer-1 dense: s1 = x @ W1 (padded)  -> [n, hpad] bf16 -------------
    s1 = pl.pallas_call(
        dense_kernel,
        out_shape=jax.ShapeDtypeStruct((n, hpad), jnp.bfloat16),
        grid_spec=pltpu.PrefetchScalarGridSpec(
            num_scalar_prefetch=0,
            grid=(n // tm,),
            in_specs=[
                pl.BlockSpec((tm, nfeat), lambda i: (i, 0)),
                pl.BlockSpec((nfeat, hpad), lambda i: (0, 0)),    # resident
            ],
            out_specs=pl.BlockSpec((tm, hpad), lambda i: (i, 0)),
        ),
        compiler_params=pltpu.CompilerParams(
            dimension_semantics=("parallel",)),
    )(xb, w1p)

    # --- conv1 (+ fused layer-2 dense): s2 = relu(adj @ s1 + b1) @ W2 -------
    s2 = pl.pallas_call(
        conv1_kernel,
        out_shape=jax.ShapeDtypeStruct((n, cpad), jnp.bfloat16),
        grid_spec=pltpu.PrefetchScalarGridSpec(
            num_scalar_prefetch=0,
            grid=(n // tm, n // tk),
            in_specs=[
                pl.BlockSpec((tm, tk), lambda i, k: (i, k)),       # adj tile (f32)
                pl.BlockSpec((tk, hpad), lambda i, k: (k, 0)),     # s1 k-slice
                pl.BlockSpec((1, hpad), lambda i, k: (0, 0)),      # b1 resident
                pl.BlockSpec((hpad, cpad), lambda i, k: (0, 0)),   # W2 resident
            ],
            out_specs=pl.BlockSpec((tm, cpad), lambda i, k: (i, 0)),
            scratch_shapes=[pltpu.VMEM((tm, hpad), jnp.float32)],
        ),
        compiler_params=conv_params,
    )(adj, s1, b1p, w2p)

    # --- conv2: z = adj @ s2 + b2  -> [n, cpad] bf16 -------------------------
    z = pl.pallas_call(
        conv2_kernel,
        out_shape=jax.ShapeDtypeStruct((n, cpad), jnp.bfloat16),
        grid_spec=pltpu.PrefetchScalarGridSpec(
            num_scalar_prefetch=0,
            grid=(n // tm, n // tk),
            in_specs=[
                pl.BlockSpec((tm, tk), lambda i, k: (i, k)),       # adj tile (f32)
                pl.BlockSpec((tk, cpad), lambda i, k: (k, 0)),     # s2 k-slice
                pl.BlockSpec((1, cpad), lambda i, k: (0, 0)),      # b2 resident
            ],
            out_specs=pl.BlockSpec((tm, cpad), lambda i, k: (i, 0)),
            scratch_shapes=[pltpu.VMEM((tm, cpad), jnp.float32)],
        ),
        compiler_params=conv_params,
    )(adj, s2, b2p)

    # --- decoder: A_pred = sigmoid(z @ z.T), 2-D output-tile grid ------------
    a_pred = pl.pallas_call(
        decoder_kernel,
        out_shape=jax.ShapeDtypeStruct((n, n), jnp.float32),
        grid_spec=pltpu.PrefetchScalarGridSpec(
            num_scalar_prefetch=0,
            grid=(n // tdm, n // tdn),
            in_specs=[
                pl.BlockSpec((tdm, cpad), lambda i, j: (i, 0)),    # z rows
                pl.BlockSpec((tdn, cpad), lambda i, j: (j, 0)),    # z "cols"
            ],
            out_specs=pl.BlockSpec((tdm, tdn), lambda i, j: (i, j)),
        ),
        compiler_params=pltpu.CompilerParams(
            dimension_semantics=("parallel", "parallel"),
            vmem_limit_bytes=32 * 1024 * 1024),
    )(z, z)
    return a_pred


# ---------------------------------------------------------------------------
# Params / reference / test
# ---------------------------------------------------------------------------
def init_params(key, nfeat, nhid, nclass):
    # Kipf-style uniform init: U(-1/sqrt(out), 1/sqrt(out)) for W and b.
    k1, k2, k3, k4 = jax.random.split(key, 4)
    s1 = 1.0 / jnp.sqrt(nhid)
    s2 = 1.0 / jnp.sqrt(nclass)
    w1 = jax.random.uniform(k1, (nfeat, nhid), jnp.float32, -s1, s1)
    b1 = jax.random.uniform(k2, (1, nhid), jnp.float32, -s1, s1)
    w2 = jax.random.uniform(k3, (nhid, nclass), jnp.float32, -s2, s2)
    b2 = jax.random.uniform(k4, (1, nclass), jnp.float32, -s2, s2)
    return w1, b1, w2, b2


def reference_forward(x, adj, w1, b1, w2, b2):
    # Pure-JAX f32 reference mirroring the PyTorch semantics.
    h1 = jnp.maximum(adj @ (x @ w1) + b1, 0.0)
    z = adj @ (h1 @ w2) + b2
    return jax.nn.sigmoid(z @ z.T)


if __name__ == "__main__":
    N, NFEAT, NHID, NCLASS = 128, 64, 32, 16

    key = jax.random.PRNGKey(0)
    kx, ka, kp = jax.random.split(key, 3)

    # Node features.
    x = jax.random.normal(kx, (N, NFEAT), jnp.float32)

    # Dense symmetric adjacency with self-loops, row-normalized (typical GCN).
    a = (jax.random.uniform(ka, (N, N)) < 0.05).astype(jnp.float32)
    a = jnp.maximum(a, a.T) + jnp.eye(N, dtype=jnp.float32)
    adj = a / jnp.sum(a, axis=1, keepdims=True)

    w1, b1, w2, b2 = init_params(kp, NFEAT, NHID, NCLASS)

    fwd = jax.jit(graph_autoencoder_forward)
    a_pred = fwd(x, adj, w1, b1, w2, b2)
    jax.block_until_ready(a_pred)

    ref = reference_forward(x, adj, w1, b1, w2, b2)
    assert a_pred.shape == (N, N)
    # bf16 MXU inputs -> compare against the f32 reference at bf16 tolerance.
    max_err = float(jnp.max(jnp.abs(a_pred - ref)))
    assert max_err < 3e-2, f"max abs err {max_err}"

    print("KERNEL_OK")
</pallas_src>

<mosaic_0001>
module attributes {stable_mosaic.version = 11 : i64} {
  func.func @dense_kernel(%arg0: i32, %arg1: memref<128x64xbf16, #tpu.memory_space<vmem>>, %arg2: memref<64x128xbf16, #tpu.memory_space<vmem>>, %arg3: memref<128x128xbf16, #tpu.memory_space<vmem>>) attributes {dimension_semantics = [#tpu.dimension_semantics<parallel>], iteration_bounds = array<i64: 1>, scalar_prefetch = 0 : i64, scratch_operands = 0 : i64, tpu.core_type = #tpu.core_type<tc>, window_params = [{transform_indices = @transform_0, window_bounds = array<i64: 128, 64>}, {pipeline_mode = #tpu.pipeline_mode<synchronous>, transform_indices = @transform_1, window_bounds = array<i64: 64, 128>}, {transform_indices = @transform_2, window_bounds = array<i64: 128, 128>}]} {
    %c0 = arith.constant 0 : index
    %c0_0 = arith.constant 0 : index
    %0 = vector.load %arg1[%c0, %c0_0] : memref<128x64xbf16, #tpu.memory_space<vmem>>, vector<128x64xbf16>
    %c0_1 = arith.constant 0 : index
    %c0_2 = arith.constant 0 : index
    %1 = vector.load %arg2[%c0_1, %c0_2] : memref<64x128xbf16, #tpu.memory_space<vmem>>, vector<64x128xbf16>
    %cst = arith.constant dense<0.000000e+00> : vector<128x128xf32>
    %2 = tpu.matmul %0, %1, %cst {dimension_numbers = #tpu.dot_dimension_numbers<[1], [0], [0], [1], [0, 0, 1, 1], [], []>} : vector<128x64xbf16>, vector<64x128xbf16>, vector<128x128xf32> -> vector<128x128xf32>
    %3 = arith.truncf %2 : vector<128x128xf32> to vector<128x128xbf16>
    %c0_3 = arith.constant 0 : index
    %c0_4 = arith.constant 0 : index
    %4 = vector.load %arg3[%c0_3, %c0_4] : memref<128x128xbf16, #tpu.memory_space<vmem>>, vector<128x128xbf16>
    tpu.vector_store %arg3[%c0_3, %c0_4], %3 {strides = array<i32>} : memref<128x128xbf16, #tpu.memory_space<vmem>>, vector<128x128xbf16>,
    return
  }
  func.func @transform_0(%arg0: i32) -> (i32, i32) {
    %c0_i32 = arith.constant 0 : i32
    %c0_i32_0 = arith.constant 0 : i32
    return %arg0, %c0_i32 : i32, i32
  }
  func.func @transform_1(%arg0: i32) -> (i32, i32) {
    %c0_i32 = arith.constant 0 : i32
    %c0_i32_0 = arith.constant 0 : i32
    %c0_i32_1 = arith.constant 0 : i32
    return %c0_i32, %c0_i32_0 : i32, i32
  }
  func.func @transform_2(%arg0: i32) -> (i32, i32) {
    %c0_i32 = arith.constant 0 : i32
    %c0_i32_0 = arith.constant 0 : i32
    return %arg0, %c0_i32 : i32, i32
  }
}

module attributes {stable_mosaic.version = 11 : i64} {
  func.func @conv1_kernel(%arg0: i32, %arg1: i32, %arg2: memref<128x128xf32, #tpu.memory_space<vmem>>, %arg3: memref<128x128xbf16, #tpu.memory_space<vmem>>, %arg4: memref<1x128xf32, #tpu.memory_space<vmem>>, %arg5: memref<128x128xbf16, #tpu.memory_space<vmem>>, %arg6: memref<128x128xbf16, #tpu.memory_space<vmem>>, %arg7: memref<128x128xf32, #tpu.memory_space<vmem>>) attributes {dimension_semantics = [#tpu.dimension_semantics<parallel>, #tpu.dimension_semantics<arbitrary>], iteration_bounds = array<i64: 1, 1>, scalar_prefetch = 0 : i64, scratch_operands = 1 : i64, tpu.core_type = #tpu.core_type<tc>, window_params = [{transform_indices = @transform_0, window_bounds = array<i64: 128, 128>}, {transform_indices = @transform_1, window_bounds = array<i64: 128, 128>}, {pipeline_mode = #tpu.pipeline_mode<synchronous>, transform_indices = @transform_2, window_bounds = array<i64: 1, 128>}, {pipeline_mode = #tpu.pipeline_mode<synchronous>, transform_indices = @transform_3, window_bounds = array<i64: 128, 128>}, {transform_indices = @transform_4, window_bounds = array<i64: 128, 128>}]} {
    %c0_i32 = arith.constant 0 : i32
    %0 = arith.cmpi eq, %arg1, %c0_i32 : i32
    %1 = arith.extui %0 : i1 to i32
    %c0_i32_0 = arith.constant 0 : i32
    %2 = arith.cmpi ne, %1, %c0_i32_0 : i32
    scf.if %2 {
      %cst_10 = arith.constant 0.000000e+00 : f32
      %13 = vector.broadcast %cst_10 : f32 to vector<128x128xf32>
      %c0_11 = arith.constant 0 : index
      %c0_12 = arith.constant 0 : index
      %14 = vector.load %arg7[%c0_11, %c0_12] : memref<128x128xf32, #tpu.memory_space<vmem>>, vector<128x128xf32>
      tpu.vector_store %arg7[%c0_11, %c0_12], %13 {strides = array<i32>} : memref<128x128xf32, #tpu.memory_space<vmem>>, vector<128x128xf32>,
    } else {
    }
    %c0 = arith.constant 0 : index
    %c0_1 = arith.constant 0 : index
    %3 = vector.load %arg7[%c0, %c0_1] : memref<128x128xf32, #tpu.memory_space<vmem>>, vector<128x128xf32>
    %c0_2 = arith.constant 0 : index
    %c0_3 = arith.constant 0 : index
    %4 = vector.load %arg2[%c0_2, %c0_3] : memref<128x128xf32, #tpu.memory_space<vmem>>, vector<128x128xf32>
    %5 = arith.truncf %4 : vector<128x128xf32> to vector<128x128xbf16>
    %c0_4 = arith.constant 0 : index
    %c0_5 = arith.constant 0 : index
    %6 = vector.load %arg3[%c0_4, %c0_5] : memref<128x128xbf16, #tpu.memory_space<vmem>>, vector<128x128xbf16>
    %cst = arith.constant dense<0.000000e+00> : vector<128x128xf32>
    %7 = tpu.matmul %5, %6, %cst {dimension_numbers = #tpu.dot_dimension_numbers<[1], [0], [0], [1], [0, 0, 1, 1], [], []>} : vector<128x128xbf16>, vector<128x128xbf16>, vector<128x128xf32> -> vector<128x128xf32>
    %8 = arith.addf %3, %7 : vector<128x128xf32>
    %c0_6 = arith.constant 0 : index
    %c0_7 = arith.constant 0 : index
    %9 = vector.load %arg7[%c0_6, %c0_7] : memref<128x128xf32, #tpu.memory_space<vmem>>, vector<128x128xf32>
    tpu.vector_store %arg7[%c0_6, %c0_7], %8 {strides = array<i32>} : memref<128x128xf32, #tpu.memory_space<vmem>>, vector<128x128xf32>,
    %c0_i32_8 = arith.constant 0 : i32
    %10 = arith.cmpi eq, %arg1, %c0_i32_8 : i32
    %11 = arith.extui %10 : i1 to i32
    %c0_i32_9 = arith.constant 0 : i32
    %12 = arith.cmpi ne, %11, %c0_i32_9 : i32
    scf.if %12 {
      %c0_10 = arith.constant 0 : index
      %c0_11 = arith.constant 0 : index
      %13 = vector.load %arg7[%c0_10, %c0_11] : memref<128x128xf32, #tpu.memory_space<vmem>>, vector<128x128xf32>
      %c0_12 = arith.constant 0 : index
      %c0_13 = arith.constant 0 : index
      %14 = vector.load %arg4[%c0_12, %c0_13] : memref<1x128xf32, #tpu.memory_space<vmem>>, vector<1x128xf32>
      %15 = vector.broadcast %14 : vector<1x128xf32> to vector<128x128xf32>
      %16 = arith.addf %13, %15 : vector<128x128xf32>
      %cst_14 = arith.constant 0.000000e+00 : f32
      %17 = vector.broadcast %cst_14 : f32 to vector<128x128xf32>
      %18 = arith.maximumf %16, %17 : vector<128x128xf32>
      %19 = arith.truncf %18 : vector<128x128xf32> to vector<128x128xbf16>
      %c0_15 = arith.constant 0 : index
      %c0_16 = arith.constant 0 : index
      %20 = vector.load %arg5[%c0_15, %c0_16] : memref<128x128xbf16, #tpu.memory_space<vmem>>, vector<128x128xbf16>
      %cst_17 = arith.constant dense<0.000000e+00> : vector<128x128xf32>
      %21 = tpu.matmul %19, %20, %cst_17 {dimension_numbers = #tpu.dot_dimension_numbers<[1], [0], [0], [1], [0, 0, 1, 1], [], []>} : vector<128x128xbf16>, vector<128x128xbf16>, vector<128x128xf32> -> vector<128x128xf32>
      %22 = arith.truncf %21 : vector<128x128xf32> to vector<128x128xbf16>
      %c0_18 = arith.constant 0 : index
      %c0_19 = arith.constant 0 : index
      %23 = vector.load %arg6[%c0_18, %c0_19] : memref<128x128xbf16, #tpu.memory_space<vmem>>, vector<128x128xbf16>
      tpu.vector_store %arg6[%c0_18, %c0_19], %22 {strides = array<i32>} : memref<128x128xbf16, #tpu.memory_space<vmem>>, vector<128x128xbf16>,
    } else {
    }
    return
  }
  func.func @transform_0(%arg0: i32, %arg1: i32) -> (i32, i32) {
    %c0_i32 = arith.constant 0 : i32
    return %arg0, %arg1 : i32, i32
  }
  func.func @transform_1(%arg0: i32, %arg1: i32) -> (i32, i32) {
    %c0_i32 = arith.constant 0 : i32
    %c0_i32_0 = arith.constant 0 : i32
    return %arg1, %c0_i32 : i32, i32
  }
  func.func @transform_2(%arg0: i32, %arg1: i32) -> (i32, i32) {
    %c0_i32 = arith.constant 0 : i32
    %c0_i32_0 = arith.constant 0 : i32
    %c0_i32_1 = arith.constant 0 : i32
    return %c0_i32, %c0_i32_0 : i32, i32
  }
  func.func @transform_3(%arg0: i32, %arg1: i32) -> (i32, i32) {
    %c0_i32 = arith.constant 0 : i32
    %c0_i32_0 = arith.constant 0 : i32
    %c0_i32_1 = arith.constant 0 : i32
    return %c0_i32, %c0_i32_0 : i32, i32
  }
  func.func @transform_4(%arg0: i32, %arg1: i32) -> (i32, i32) {
    %c0_i32 = arith.constant 0 : i32
    %c0_i32_0 = arith.constant 0 : i32
    return %arg0, %c0_i32 : i32, i32
  }
}

module attributes {stable_mosaic.version = 11 : i64} {
  func.func @conv2_kernel(%arg0: i32, %arg1: i32, %arg2: memref<128x128xf32, #tpu.memory_space<vmem>>, %arg3: memref<128x128xbf16, #tpu.memory_space<vmem>>, %arg4: memref<1x128xf32, #tpu.memory_space<vmem>>, %arg5: memref<128x128xbf16, #tpu.memory_space<vmem>>, %arg6: memref<128x128xf32, #tpu.memory_space<vmem>>) attributes {dimension_semantics = [#tpu.dimension_semantics<parallel>, #tpu.dimension_semantics<arbitrary>], iteration_bounds = array<i64: 1, 1>, scalar_prefetch = 0 : i64, scratch_operands = 1 : i64, tpu.core_type = #tpu.core_type<tc>, window_params = [{transform_indices = @transform_0, window_bounds = array<i64: 128, 128>}, {transform_indices = @transform_1, window_bounds = array<i64: 128, 128>}, {pipeline_mode = #tpu.pipeline_mode<synchronous>, transform_indices = @transform_2, window_bounds = array<i64: 1, 128>}, {transform_indices = @transform_3, window_bounds = array<i64: 128, 128>}]} {
    %c0_i32 = arith.constant 0 : i32
    %0 = arith.cmpi eq, %arg1, %c0_i32 : i32
    %1 = arith.extui %0 : i1 to i32
    %c0_i32_0 = arith.constant 0 : i32
    %2 = arith.cmpi ne, %1, %c0_i32_0 : i32
    scf.if %2 {
      %cst_10 = arith.constant 0.000000e+00 : f32
      %13 = vector.broadcast %cst_10 : f32 to vector<128x128xf32>
      %c0_11 = arith.constant 0 : index
      %c0_12 = arith.constant 0 : index
      %14 = vector.load %arg6[%c0_11, %c0_12] : memref<128x128xf32, #tpu.memory_space<vmem>>, vector<128x128xf32>
      tpu.vector_store %arg6[%c0_11, %c0_12], %13 {strides = array<i32>} : memref<128x128xf32, #tpu.memory_space<vmem>>, vector<128x128xf32>,
    } else {
    }
    %c0 = arith.constant 0 : index
    %c0_1 = arith.constant 0 : index
    %3 = vector.load %arg6[%c0, %c0_1] : memref<128x128xf32, #tpu.memory_space<vmem>>, vector<128x128xf32>
    %c0_2 = arith.constant 0 : index
    %c0_3 = arith.constant 0 : index
    %4 = vector.load %arg2[%c0_2, %c0_3] : memref<128x128xf32, #tpu.memory_space<vmem>>, vector<128x128xf32>
    %5 = arith.truncf %4 : vector<128x128xf32> to vector<128x128xbf16>
    %c0_4 = arith.constant 0 : index
    %c0_5 = arith.constant 0 : index
    %6 = vector.load %arg3[%c0_4, %c0_5] : memref<128x128xbf16, #tpu.memory_space<vmem>>, vector<128x128xbf16>
    %cst = arith.constant dense<0.000000e+00> : vector<128x128xf32>
    %7 = tpu.matmul %5, %6, %cst {dimension_numbers = #tpu.dot_dimension_numbers<[1], [0], [0], [1], [0, 0, 1, 1], [], []>} : vector<128x128xbf16>, vector<128x128xbf16>, vector<128x128xf32> -> vector<128x128xf32>
    %8 = arith.addf %3, %7 : vector<128x128xf32>
    %c0_6 = arith.constant 0 : index
    %c0_7 = arith.constant 0 : index
    %9 = vector.load %arg6[%c0_6, %c0_7] : memref<128x128xf32, #tpu.memory_space<vmem>>, vector<128x128xf32>
    tpu.vector_store %arg6[%c0_6, %c0_7], %8 {strides = array<i32>} : memref<128x128xf32, #tpu.memory_space<vmem>>, vector<128x128xf32>,
    %c0_i32_8 = arith.constant 0 : i32
    %10 = arith.cmpi eq, %arg1, %c0_i32_8 : i32
    %11 = arith.extui %10 : i1 to i32
    %c0_i32_9 = arith.constant 0 : i32
    %12 = arith.cmpi ne, %11, %c0_i32_9 : i32
    scf.if %12 {
      %c0_10 = arith.constant 0 : index
      %c0_11 = arith.constant 0 : index
      %13 = vector.load %arg6[%c0_10, %c0_11] : memref<128x128xf32, #tpu.memory_space<vmem>>, vector<128x128xf32>
      %c0_12 = arith.constant 0 : index
      %c0_13 = arith.constant 0 : index
      %14 = vector.load %arg4[%c0_12, %c0_13] : memref<1x128xf32, #tpu.memory_space<vmem>>, vector<1x128xf32>
      %15 = vector.broadcast %14 : vector<1x128xf32> to vector<128x128xf32>
      %16 = arith.addf %13, %15 : vector<128x128xf32>
      %17 = arith.truncf %16 : vector<128x128xf32> to vector<128x128xbf16>
      %c0_14 = arith.constant 0 : index
      %c0_15 = arith.constant 0 : index
      %18 = vector.load %arg5[%c0_14, %c0_15] : memref<128x128xbf16, #tpu.memory_space<vmem>>, vector<128x128xbf16>
      tpu.vector_store %arg5[%c0_14, %c0_15], %17 {strides = array<i32>} : memref<128x128xbf16, #tpu.memory_space<vmem>>, vector<128x128xbf16>,
    } else {
    }
    return
  }
  func.func @transform_0(%arg0: i32, %arg1: i32) -> (i32, i32) {
    %c0_i32 = arith.constant 0 : i32
    return %arg0, %arg1 : i32, i32
  }
  func.func @transform_1(%arg0: i32, %arg1: i32) -> (i32, i32) {
    %c0_i32 = arith.constant 0 : i32
    %c0_i32_0 = arith.constant 0 : i32
    return %arg1, %c0_i32 : i32, i32
  }
  func.func @transform_2(%arg0: i32, %arg1: i32) -> (i32, i32) {
    %c0_i32 = arith.constant 0 : i32
    %c0_i32_0 = arith.constant 0 : i32
    %c0_i32_1 = arith.constant 0 : i32
    return %c0_i32, %c0_i32_0 : i32, i32
  }
  func.func @transform_3(%arg0: i32, %arg1: i32) -> (i32, i32) {
    %c0_i32 = arith.constant 0 : i32
    %c0_i32_0 = arith.constant 0 : i32
    return %arg0, %c0_i32 : i32, i32
  }
}

module attributes {stable_mosaic.version = 11 : i64} {
  func.func @decoder_kernel(%arg0: i32, %arg1: i32, %arg2: memref<128x128xbf16, #tpu.memory_space<vmem>>, %arg3: memref<128x128xbf16, #tpu.memory_space<vmem>>, %arg4: memref<128x128xf32, #tpu.memory_space<vmem>>) attributes {dimension_semantics = [#tpu.dimension_semantics<parallel>, #tpu.dimension_semantics<parallel>], iteration_bounds = array<i64: 1, 1>, scalar_prefetch = 0 : i64, scratch_operands = 0 : i64, tpu.core_type = #tpu.core_type<tc>, window_params = [{transform_indices = @transform_0, window_bounds = array<i64: 128, 128>}, {transform_indices = @transform_1, window_bounds = array<i64: 128, 128>}, {transform_indices = @transform_2, window_bounds = array<i64: 128, 128>}]} {
    %c0 = arith.constant 0 : index
    %c0_0 = arith.constant 0 : index
    %0 = vector.load %arg2[%c0, %c0_0] : memref<128x128xbf16, #tpu.memory_space<vmem>>, vector<128x128xbf16>
    %c0_1 = arith.constant 0 : index
    %c0_2 = arith.constant 0 : index
    %1 = vector.load %arg3[%c0_1, %c0_2] : memref<128x128xbf16, #tpu.memory_space<vmem>>, vector<128x128xbf16>
    %cst = arith.constant dense<0.000000e+00> : vector<128x128xf32>
    %2 = tpu.matmul %0, %1, %cst {dimension_numbers = #tpu.dot_dimension_numbers<[1], [1], [0], [0], [0, 0, 1, 0], [], []>} : vector<128x128xbf16>, vector<128x128xbf16>, vector<128x128xf32> -> vector<128x128xf32>
    %3 = arith.negf %2 : vector<128x128xf32>
    %4 = math.exp %3 : vector<128x128xf32>
    %cst_3 = arith.constant 1.000000e+00 : f32
    %5 = vector.broadcast %cst_3 : f32 to vector<128x128xf32>
    %6 = arith.addf %5, %4 : vector<128x128xf32>
    %7 = arith.divf %5, %6 : vector<128x128xf32>
    %c0_4 = arith.constant 0 : index
    %c0_5 = arith.constant 0 : index
    %8 = vector.load %arg4[%c0_4, %c0_5] : memref<128x128xf32, #tpu.memory_space<vmem>>, vector<128x128xf32>
    tpu.vector_store %arg4[%c0_4, %c0_5], %7 {strides = array<i32>} : memref<128x128xf32, #tpu.memory_space<vmem>>, vector<128x128xf32>,
    return
  }
  func.func @transform_0(%arg0: i32, %arg1: i32) -> (i32, i32) {
    %c0_i32 = arith.constant 0 : i32
    %c0_i32_0 = arith.constant 0 : i32
    return %arg0, %c0_i32 : i32, i32
  }
  func.func @transform_1(%arg0: i32, %arg1: i32) -> (i32, i32) {
    %c0_i32 = arith.constant 0 : i32
    %c0_i32_0 = arith.constant 0 : i32
    return %arg1, %c0_i32 : i32, i32
  }
  func.func @transform_2(%arg0: i32, %arg1: i32) -> (i32, i32) {
    %c0_i32 = arith.constant 0 : i32
    return %arg0, %arg1 : i32, i32
  }
}

</mosaic_0001>

<llo_original>
// kernel: graph_autoencoder_forward.7
$region0: #{graph_autoencoder_forward.7}
  #allocation0 [shape = 'u32[]', space=smem, size = 0x4, offset = 0x4, fixed_abs, tag = 'smem constant byte address 0x4 - core index']
  #allocation1 [shape = 'u32[144,128]{1,0:T(1,128)}', space=vmem, size = 0x12000, scoped, tag = 'internal scratch']
  %s0 = inlined_call_operand.vmem [shape: bf16[128,128], index: 0, kind: input, shape index: {}, may-alias: {0,1}]
  %s1 = inlined_call_operand.vmem [shape: bf16[128,128], index: 1, kind: input, shape index: {}, may-alias: {0,1}]
  %s2 = inlined_call_operand.hbm [shape: f32[128,128], index: 2, kind: output, shape index: {}]
  %s3 = sld [smem:[#allocation0]]
  $region18: #{graph_autoencoder_forward.7} parent=0
    _
  %s5 = ssub.s32 1, %s3
  %s6 = scalar_select 0, %s5, %s3
  $region1: #{graph_autoencoder_forward.7} parent=0
    #allocation2 [shape = 'u8[65536]{0}', space=vmem, size = 0x10000, scoped, tag = 'output window, operand 0, single buffered']
    #allocation3 [shape = 's32[1]{0}', space=sflag, size = 0x4, scoped, tag = 'scoped memory for graph_autoencoder_forward.7']
    %7 = vsyncpa [#allocation3], 0
    // Predicated region
    $region2: #{graph_autoencoder_forward.7} parent=1 // pred_check
      _
    $region3: #{graph_autoencoder_forward.7} parent=1 // pred_check_branch
      %9 = sbr.rel (0) target = $region5
    $region4: #{graph_autoencoder_forward.7} parent=1 // pred_region
      _
    $region5: #{graph_autoencoder_forward.7} parent=1 // pred_fallthru
      _
    // Predicated region
    $region6: #{graph_autoencoder_forward.7} parent=1 // pred_check
      _
    $region7: #{graph_autoencoder_forward.7} parent=1 // pred_check_branch
      %11 = sbr.rel (0) target = $region9
    $region8: #{graph_autoencoder_forward.7} parent=1 // pred_region
      _
    $region9: #{graph_autoencoder_forward.7} parent=1 // pred_fallthru
      _
    %v13 = vld [vmem:[%s0] sm:$0xf]
    %v14 = vld [vmem:[%s0 + $0x4] sm:$0xf]
    %v15 = vld [vmem:[%s0 + $0x8] sm:$0xf]
    %v16 = vld [vmem:[%s0 + $0xc] sm:$0xf]
    %v17 = vld [vmem:[%s0 + $0x10] sm:$0xf]
    %v18 = vld [vmem:[%s0 + $0x14] sm:$0xf]
    %v19 = vld [vmem:[%s0 + $0x18] sm:$0xf]
    %v20 = vld [vmem:[%s0 + $0x1c] sm:$0xf]
    %v21 = vld [vmem:[%s0 + $0x20] sm:$0xf]
    %v22 = vld [vmem:[%s0 + $0x24] sm:$0xf]
    %v23 = vld [vmem:[%s0 + $0x28] sm:$0xf]
    %v24 = vld [vmem:[%s0 + $0x2c] sm:$0xf]
    %v25 = vld [vmem:[%s0 + $0x30] sm:$0xf]
    %v26 = vld [vmem:[%s0 + $0x34] sm:$0xf]
    %v27 = vld [vmem:[%s0 + $0x38] sm:$0xf]
    %v28 = vld [vmem:[%s0 + $0x3c] sm:$0xf]
    %v29 = vld [vmem:[%s1] sm:$0xf]
    %v30 = vld [vmem:[%s1 + $0x4] sm:$0xf]
    %v31 = vld [vmem:[%s1 + $0x8] sm:$0xf]
    %v32 = vld [vmem:[%s1 + $0xc] sm:$0xf]
    %v33 = vld [vmem:[%s1 + $0x10] sm:$0xf]
    %v34 = vld [vmem:[%s1 + $0x14] sm:$0xf]
    %v35 = vld [vmem:[%s1 + $0x18] sm:$0xf]
    %v36 = vld [vmem:[%s1 + $0x1c] sm:$0xf]
    %v37 = vld [vmem:[%s1 + $0x20] sm:$0xf]
    %v38 = vld [vmem:[%s1 + $0x24] sm:$0xf]
    %v39 = vld [vmem:[%s1 + $0x28] sm:$0xf]
    %v40 = vld [vmem:[%s1 + $0x2c] sm:$0xf]
    %v41 = vld [vmem:[%s1 + $0x30] sm:$0xf]
    %v42 = vld [vmem:[%s1 + $0x34] sm:$0xf]
    %v43 = vld [vmem:[%s1 + $0x38] sm:$0xf]
    %v44 = vld [vmem:[%s1 + $0x3c] sm:$0xf]
    %v61 = vunpack.c.l.b16 %v13
    %v62 = vunpack.c.l.b16 %v14
    %v63 = vunpack.c.l.b16 %v15
    %v64 = vunpack.c.l.b16 %v16
    %v65 = vunpack.c.l.b16 %v17
    %v66 = vunpack.c.l.b16 %v18
    %v67 = vunpack.c.l.b16 %v19
    %v68 = vunpack.c.l.b16 %v20
    %v69 = vunpack.c.l.b16 %v21
    %v70 = vunpack.c.l.b16 %v22
    %v71 = vunpack.c.l.b16 %v23
    %v72 = vunpack.c.l.b16 %v24
    %v73 = vunpack.c.l.b16 %v25
    %v74 = vunpack.c.l.b16 %v26
    %v75 = vunpack.c.l.b16 %v27
    %v76 = vunpack.c.l.b16 %v28
    %v77 = vpack.c.b16 %v62, %v61
    %v78 = vpack.c.b16 %v64, %v63
    %v79 = vpack.c.b16 %v66, %v65
    %v80 = vpack.c.b16 %v68, %v67
    %v81 = vpack.c.b16 %v70, %v69
    %v82 = vpack.c.b16 %v72, %v71
    %v83 = vpack.c.b16 %v74, %v73
    %v84 = vpack.c.b16 %v76, %v75
    %v109 = vunpack.c.l.b16 %v29
    %v110 = vunpack.c.l.b16 %v30
    %v111 = vunpack.c.l.b16 %v31
    %v112 = vunpack.c.l.b16 %v32
    %v113 = vunpack.c.l.b16 %v33
    %v114 = vunpack.c.l.b16 %v34
    %v115 = vunpack.c.l.b16 %v35
    %v116 = vunpack.c.l.b16 %v36
    %v117 = vunpack.c.l.b16 %v37
    %v118 = vunpack.c.l.b16 %v38
    %v119 = vunpack.c.l.b16 %v39
    %v120 = vunpack.c.l.b16 %v40
    %v121 = vunpack.c.l.b16 %v41
    %v122 = vunpack.c.l.b16 %v42
    %v123 = vunpack.c.l.b16 %v43
    %v124 = vunpack.c.l.b16 %v44
    %v125 = vpack.c.b16 %v110, %v109
    %v126 = vpack.c.b16 %v112, %v111
    %v127 = vpack.c.b16 %v114, %v113
    %v128 = vpack.c.b16 %v116, %v115
    %v129 = vpack.c.b16 %v118, %v117
    %v130 = vpack.c.b16 %v120, %v119
    %v131 = vpack.c.b16 %v122, %v121
    %v132 = vpack.c.b16 %v124, %v123
    %141 = vmatprep.subr.bf16.mxu0 0
    %142 = vmatpush1.bf16.xpose.msra.mxu0 %v125
    %143 = vmatprep.subr.bf16.mxu0 0
    %144 = vmatpush1.bf16.xpose.msra.mxu0 %v126
    %145 = vmatprep.subr.bf16.mxu0 0
    %146 = vmatpush1.bf16.xpose.msra.mxu0 %v127
    %147 = vmatprep.subr.bf16.mxu0 0
    %148 = vmatpush1.bf16.xpose.msra.mxu0 %v128
    %149 = vmatprep.subr.bf16.mxu0 0
    %150 = vmatpush1.bf16.xpose.msra.mxu0 %v129
    %151 = vmatprep.subr.bf16.mxu0 0
    %152 = vmatpush1.bf16.xpose.msra.mxu0 %v130
    %153 = vmatprep.subr.bf16.mxu0 0
    %154 = vmatpush1.bf16.xpose.msra.mxu0 %v131
    %155 = vmatprep.subr.bf16.mxu0 0
    %156 = vmatpush1.bf16.xpose.msra.mxu0 %v132
    %157 = vmatprep.subr.bf16.mxu0 0
    %158 = vmatpush1.bf16.xpose.msra.mxu0 0
    %159 = vmatprep.subr.bf16.mxu0 0
    %160 = vmatpush1.bf16.xpose.msra.mxu0 0
    %161 = vmatprep.subr.bf16.mxu0 0
    %162 = vmatpush1.bf16.xpose.msra.mxu0 0
    %163 = vmatprep.subr.bf16.mxu0 0
    %164 = vmatpush1.bf16.xpose.msra.mxu0 0
    %165 = vmatprep.subr.bf16.mxu0 0
    %166 = vmatpush1.bf16.xpose.msra.mxu0 0
    %167 = vmatprep.subr.bf16.mxu0 0
    %168 = vmatpush1.bf16.xpose.msra.mxu0 0
    %169 = vmatprep.subr.bf16.mxu0 0
    %170 = vmatpush1.bf16.xpose.msra.mxu0 0
    %171 = vmatprep.subr.bf16.mxu0 0
    %172 = vmatpush1.bf16.xpose.msra.mxu0 0
    %173 = vmatprep.mubr.bf16.mxu0 0
    %174 = vmatmul.mubr.bf16.gmra.mrb[0].mxu0 %v77
    %v175 = vpop.f32.mrb[0].mxu0
    %v176 = vadd.f32 0.0, %v175
    %v177 = vpop.f32.mrb[0].mxu0
    %v178 = vpop.f32.mrb[0].mxu0
    %v179 = vadd.f32 0.0, %v178
    %v180 = vpop.f32.mrb[0].mxu0
    %181 = vmatprep.mubr.bf16.mxu0 0
    %182 = vmatmul.mubr.bf16.gmra.mrb[0].mxu0 %v78
    %v183 = vpop.f32.mrb[0].mxu0
    %v184 = vadd.f32 0.0, %v183
    %v185 = vpop.f32.mrb[0].mxu0
    %v186 = vpop.f32.mrb[0].mxu0
    %v187 = vadd.f32 0.0, %v186
    %v188 = vpop.f32.mrb[0].mxu0
    %189 = vmatprep.mubr.bf16.mxu0 0
    %190 = vmatmul.mubr.bf16.gmra.mrb[0].mxu0 %v79
    %v191 = vpop.f32.mrb[0].mxu0
    %v192 = vadd.f32 0.0, %v191
    %v193 = vpop.f32.mrb[0].mxu0
    %v194 = vpop.f32.mrb[0].mxu0
    %v195 = vadd.f32 0.0, %v194
    %v196 = vpop.f32.mrb[0].mxu0
    %197 = vmatprep.mubr.bf16.mxu0 0
    %198 = vmatmul.mubr.bf16.gmra.mrb[0].mxu0 %v80
    %v199 = vpop.f32.mrb[0].mxu0
    %v200 = vadd.f32 0.0, %v199
    %v201 = vpop.f32.mrb[0].mxu0
    %v202 = vpop.f32.mrb[0].mxu0
    %v203 = vadd.f32 0.0, %v202
    %v204 = vpop.f32.mrb[0].mxu0
    %205 = vmatprep.mubr.bf16.mxu0 0
    %206 = vmatmul.mubr.bf16.gmra.mrb[0].mxu0 %v81
    %v207 = vpop.f32.mrb[0].mxu0
    %v208 = vadd.f32 0.0, %v207
    %v209 = vpop.f32.mrb[0].mxu0
    %v210 = vpop.f32.mrb[0].mxu0
    %v211 = vadd.f32 0.0, %v210
    %v212 = vpop.f32.mrb[0].mxu0
    %213 = vmatprep.mubr.bf16.mxu0 0
    %214 = vmatmul.mubr.bf16.gmra.mrb[0].mxu0 %v82
    %v215 = vpop.f32.mrb[0].mxu0
    %v216 = vadd.f32 0.0, %v215
    %v217 = vpop.f32.mrb[0].mxu0
    %v218 = vpop.f32.mrb[0].mxu0
    %v219 = vadd.f32 0.0, %v218
    %v220 = vpop.f32.mrb[0].mxu0
    %221 = vmatprep.mubr.bf16.mxu0 0
    %222 = vmatmul.mubr.bf16.gmra.mrb[0].mxu0 %v83
    %v223 = vpop.f32.mrb[0].mxu0
    %v224 = vadd.f32 0.0, %v223
    %v225 = vpop.f32.mrb[0].mxu0
    %v226 = vpop.f32.mrb[0].mxu0
    %v227 = vadd.f32 0.0, %v226
    %v228 = vpop.f32.mrb[0].mxu0
    %229 = vmatprep.mubr.bf16.mxu0 0
    %230 = vmatmul.mubr.bf16.gmra.mrb[0].mxu0 %v84
    %v231 = vpop.f32.mrb[0].mxu0
    %v232 = vadd.f32 0.0, %v231
    %v233 = vpop.f32.mrb[0].mxu0
    %v234 = vpop.f32.mrb[0].mxu0
    %v235 = vadd.f32 0.0, %v234
    %v236 = vpop.f32.mrb[0].mxu0
    %237 = vdwg.mxu0
    %v238 = vxor.u32 %v176, 2147483648
    %v239 = vxor.u32 %v179, 2147483648
    %v240 = vxor.u32 %v184, 2147483648
    %v241 = vxor.u32 %v187, 2147483648
    %v242 = vxor.u32 %v192, 2147483648
    %v243 = vxor.u32 %v195, 2147483648
    %v244 = vxor.u32 %v200, 2147483648
    %v245 = vxor.u32 %v203, 2147483648
    %v246 = vxor.u32 %v208, 2147483648
    %v247 = vxor.u32 %v211, 2147483648
    %v248 = vxor.u32 %v216, 2147483648
    %v249 = vxor.u32 %v219, 2147483648
    %v250 = vxor.u32 %v224, 2147483648
    %v251 = vxor.u32 %v227, 2147483648
    %v252 = vxor.u32 %v232, 2147483648
    %v253 = vxor.u32 %v235, 2147483648
    %v254 = vmul.f32 %v238, 1.442695
    %v255 = vpow.pop %v254
    %v256 = vmul.f32 %v239, 1.442695
    %v257 = vpow.pop %v256
    %v258 = vmul.f32 %v240, 1.442695
    %v259 = vpow.pop %v258
    %v260 = vmul.f32 %v241, 1.442695
    %v261 = vpow.pop %v260
    %v262 = vmul.f32 %v242, 1.442695
    %v263 = vpow.pop %v262
    %v264 = vmul.f32 %v243, 1.442695
    %v265 = vpow.pop %v264
    %v266 = vmul.f32 %v244, 1.442695
    %v267 = vpow.pop %v266
    %v268 = vmul.f32 %v245, 1.442695
    %v269 = vpow.pop %v268
    %v270 = vmul.f32 %v246, 1.442695
    %v271 = vpow.pop %v270
    %v272 = vmul.f32 %v247, 1.442695
    %v273 = vpow.pop %v272
    %v274 = vmul.f32 %v248, 1.442695
    %v275 = vpow.pop %v274
    %v276 = vmul.f32 %v249, 1.442695
    %v277 = vpow.pop %v276
    %v278 = vmul.f32 %v250, 1.442695
    %v279 = vpow.pop %v278
    %v280 = vmul.f32 %v251, 1.442695
    %v281 = vpow.pop %v280
    %v282 = vmul.f32 %v252, 1.442695
    %v283 = vpow.pop %v282
    %v284 = vmul.f32 %v253, 1.442695
    %v285 = vpow.pop %v284
    %v286 = vadd.f32 %v255, 1.0
    %v287 = vadd.f32 %v257, 1.0
    %v288 = vadd.f32 %v259, 1.0
    %v289 = vadd.f32 %v261, 1.0
    %v290 = vadd.f32 %v263, 1.0
    %v291 = vadd.f32 %v265, 1.0
    %v292 = vadd.f32 %v267, 1.0
    %v293 = vadd.f32 %v269, 1.0
    %v294 = vadd.f32 %v271, 1.0
    %v295 = vadd.f32 %v273, 1.0
    %v296 = vadd.f32 %v275, 1.0
    %v297 = vadd.f32 %v277, 1.0
    %v298 = vadd.f32 %v279, 1.0
    %v299 = vadd.f32 %v281, 1.0
    %v300 = vadd.f32 %v283, 1.0
    %v301 = vadd.f32 %v285, 1.0
    %v302 = vrcp.pop %v286
    %v303 = vmul.f32 1.0, %v302
    %v304 = vrcp.pop %v287
    %v305 = vmul.f32 1.0, %v304
    %v306 = vrcp.pop %v288
    %v307 = vmul.f32 1.0, %v306
    %v308 = vrcp.pop %v289
    %v309 = vmul.f32 1.0, %v308
    %v310 = vrcp.pop %v290
    %v311 = vmul.f32 1.0, %v310
    %v312 = vrcp.pop %v291
    %v313 = vmul.f32 1.0, %v312
    %v314 = vrcp.pop %v292
    %v315 = vmul.f32 1.0, %v314
    %v316 = vrcp.pop %v293
    %v317 = vmul.f32 1.0, %v316
    %v318 = vrcp.pop %v294
    %v319 = vmul.f32 1.0, %v318
    %v320 = vrcp.pop %v295
    %v321 = vmul.f32 1.0, %v320
    %v322 = vrcp.pop %v296
    %v323 = vmul.f32 1.0, %v322
    %v324 = vrcp.pop %v297
    %v325 = vmul.f32 1.0, %v324
    %v326 = vrcp.pop %v298
    %v327 = vmul.f32 1.0, %v326
    %v328 = vrcp.pop %v299
    %v329 = vmul.f32 1.0, %v328
    %v330 = vrcp.pop %v300
    %v331 = vmul.f32 1.0, %v330
    %v332 = vrcp.pop %v301
    %v333 = vmul.f32 1.0, %v332
    %334 = vst [vmem:[#allocation2] sm:$0xff] %v303
    %335 = vst [vmem:[#allocation2 + $0x8] sm:$0xff] %v305
    %336 = vst [vmem:[#allocation2 + $0x10] sm:$0xff] %v307
    %337 = vst [vmem:[#allocation2 + $0x18] sm:$0xff] %v309
    %338 = vst [vmem:[#allocation2 + $0x20] sm:$0xff] %v311
    %339 = vst [vmem:[#allocation2 + $0x28] sm:$0xff] %v313
    %340 = vst [vmem:[#allocation2 + $0x30] sm:$0xff] %v315
    %341 = vst [vmem:[#allocation2 + $0x38] sm:$0xff] %v317
    %342 = vst [vmem:[#allocation2 + $0x40] sm:$0xff] %v319
    %343 = vst [vmem:[#allocation2 + $0x48] sm:$0xff] %v321
    %344 = vst [vmem:[#allocation2 + $0x50] sm:$0xff] %v323
    %345 = vst [vmem:[#allocation2 + $0x58] sm:$0xff] %v325
    %346 = vst [vmem:[#allocation2 + $0x60] sm:$0xff] %v327
    %347 = vst [vmem:[#allocation2 + $0x68] sm:$0xff] %v329
    %348 = vst [vmem:[#allocation2 + $0x70] sm:$0xff] %v331
    %349 = vst [vmem:[#allocation2 + $0x78] sm:$0xff] %v333
    // Predicated region
    $region10: #{graph_autoencoder_forward.7} parent=1 // pred_check
      _
    $region11: #{graph_autoencoder_forward.7} parent=1 // pred_check_branch
      %351 = sbr.rel (0) target = $region13
    $region12: #{graph_autoencoder_forward.7} parent=1 // pred_region
      %s353 = ssub.s32 2048, 2048
      %354 = vsyncadd [#allocation3], %s353
      %s355 = sshll.u32 [#allocation2], 4
      %s356 = int_to_ptr.vmem [resolvable:$true] %s355
      %361 = dma.vmem_to_hbm [thread:$0]  %s356, 2048, %s2, [#allocation3], 128, 128, 8
    $region13: #{graph_autoencoder_forward.7} parent=1 // pred_fallthru
      _
    // Predicated region
    $region14: #{graph_autoencoder_forward.7} parent=1 // pred_check
      _
    $region15: #{graph_autoencoder_forward.7} parent=1 // pred_check_branch
      %363 = sbr.rel (0) target = $region17
    $region16: #{graph_autoencoder_forward.7} parent=1 // pred_region
      %364 = dma.done [#allocation3], 2048
    $region17: #{graph_autoencoder_forward.7} parent=1 // pred_fallthru
      _
    %365 = vsyncpa [#allocation3], 1

// kernel: graph_autoencoder_forward.6
$region0: #{graph_autoencoder_forward.6}
  #allocation0 [shape = 'u32[]', space=smem, size = 0x4, offset = 0x4, fixed_abs, tag = 'smem constant byte address 0x4 - core index']
  #allocation1 [shape = 'u32[144,128]{1,0:T(1,128)}', space=vmem, size = 0x12000, scoped, tag = 'internal scratch']
  #allocation2 [shape = 'f32[128,128]{1,0:T(8,128)}', space=vmem, size = 0x10000, scoped, tag = 'scratch operand']
  %s0 = inlined_call_operand.vmem [shape: f32[128,128], index: 0, kind: input, shape index: {}]
  %s1 = inlined_call_operand.vmem [shape: bf16[128,128], index: 1, kind: input, shape index: {}]
  %s2 = inlined_call_operand.vmem [shape: f32[1,128], index: 2, kind: input, shape index: {}]
  %s3 = inlined_call_operand.vmem [shape: bf16[128,128], index: 3, kind: output, shape index: {}]
  %s4 = sld [smem:[#allocation0]]
  $region30: #{graph_autoencoder_forward.6} parent=0
    _
  %s6 = ssub.s32 1, %s4
  %s7 = scalar_select 0, %s6, %s4
  // Predicated region
  $region2: #{graph_autoencoder_forward.6} parent=0 // pred_check
    _
  $region3: #{graph_autoencoder_forward.6} parent=0 // pred_check_branch
    %9 = sbr.rel (0) target = $region5
  $region4: #{graph_autoencoder_forward.6} parent=0 // pred_region
    _
  $region5: #{graph_autoencoder_forward.6} parent=0 // pred_fallthru
    _
  // Predicated region
  $region6: #{graph_autoencoder_forward.6} parent=0 // pred_check
    _
  $region7: #{graph_autoencoder_forward.6} parent=0 // pred_check_branch
    %11 = sbr.rel (0) target = $region9
  $region8: #{graph_autoencoder_forward.6} parent=0 // pred_region
    _
  $region9: #{graph_autoencoder_forward.6} parent=0 // pred_fallthru
    _
  // Predicated region
  $region10: #{graph_autoencoder_forward.6} parent=0 // pred_check
    _
  $region11: #{graph_autoencoder_forward.6} parent=0 // pred_check_branch
    %13 = sbr.rel (0) target = $region13
  $region12: #{graph_autoencoder_forward.6} parent=0 // pred_region
    _
  $region13: #{graph_autoencoder_forward.6} parent=0 // pred_fallthru
    _
  %p15 = scmp.eq.s32.totalorder 0, 0
  // Predicated region
  $region14: #{graph_autoencoder_forward.6} parent=0 // pred_check
    %p16 = pneg %p15
  $region15: #{graph_autoencoder_forward.6} parent=0 // pred_check_branch
    %18 = sbr.rel (%p16) target = $region17
  $region16: #{graph_autoencoder_forward.6} parent=0 // pred_region
    %19 = vst [vmem:[#allocation2] sm:$0xff] 0.0
    %20 = vst [vmem:[#allocation2 + $0x8] sm:$0xff] 0.0
    %21 = vst [vmem:[#allocation2 + $0x10] sm:$0xff] 0.0
    %22 = vst [vmem:[#allocation2 + $0x18] sm:$0xff] 0.0
    %23 = vst [vmem:[#allocation2 + $0x20] sm:$0xff] 0.0
    %24 = vst [vmem:[#allocation2 + $0x28] sm:$0xff] 0.0
    %25 = vst [vmem:[#allocation2 + $0x30] sm:$0xff] 0.0
    %26 = vst [vmem:[#allocation2 + $0x38] sm:$0xff] 0.0
    %27 = vst [vmem:[#allocation2 + $0x40] sm:$0xff] 0.0
    %28 = vst [vmem:[#allocation2 + $0x48] sm:$0xff] 0.0
    %29 = vst [vmem:[#allocation2 + $0x50] sm:$0xff] 0.0
    %30 = vst [vmem:[#allocation2 + $0x58] sm:$0xff] 0.0
    %31 = vst [vmem:[#allocation2 + $0x60] sm:$0xff] 0.0
    %32 = vst [vmem:[#allocation2 + $0x68] sm:$0xff] 0.0
    %33 = vst [vmem:[#allocation2 + $0x70] sm:$0xff] 0.0
    %34 = vst [vmem:[#allocation2 + $0x78] sm:$0xff] 0.0
  $region17: #{graph_autoencoder_forward.6} parent=0 // pred_fallthru
    _
  %v35 = vld [vmem:[#allocation2] sm:$0xff]
  %v36 = vld [vmem:[#allocation2 + $0x8] sm:$0xff]
  %v37 = vld [vmem:[#allocation2 + $0x10] sm:$0xff]
  %v38 = vld [vmem:[#allocation2 + $0x18] sm:$0xff]
  %v39 = vld [vmem:[#allocation2 + $0x20] sm:$0xff]
  %v40 = vld [vmem:[#allocation2 + $0x28] sm:$0xff]
  %v41 = vld [vmem:[#allocation2 + $0x30] sm:$0xff]
  %v42 = vld [vmem:[#allocation2 + $0x38] sm:$0xff]
  %v43 = vld [vmem:[#allocation2 + $0x40] sm:$0xff]
  %v44 = vld [vmem:[#allocation2 + $0x48] sm:$0xff]
  %v45 = vld [vmem:[#allocation2 + $0x50] sm:$0xff]
  %v46 = vld [vmem:[#allocation2 + $0x58] sm:$0xff]
  %v47 = vld [vmem:[#allocation2 + $0x60] sm:$0xff]
  %v48 = vld [vmem:[#allocation2 + $0x68] sm:$0xff]
  %v49 = vld [vmem:[#allocation2 + $0x70] sm:$0xff]
  %v50 = vld [vmem:[#allocation2 + $0x78] sm:$0xff]
  %v51 = vld [vmem:[%s0] sm:$0xff]
  %v52 = vld [vmem:[%s0 + $0x8] sm:$0xff]
  %v53 = vld [vmem:[%s0 + $0x10] sm:$0xff]
  %v54 = vld [vmem:[%s0 + $0x18] sm:$0xff]
  %v55 = vld [vmem:[%s0 + $0x20] sm:$0xff]
  %v56 = vld [vmem:[%s0 + $0x28] sm:$0xff]
  %v57 = vld [vmem:[%s0 + $0x30] sm:$0xff]
  %v58 = vld [vmem:[%s0 + $0x38] sm:$0xff]
  %v59 = vld [vmem:[%s0 + $0x40] sm:$0xff]
  %v60 = vld [vmem:[%s0 + $0x48] sm:$0xff]
  %v61 = vld [vmem:[%s0 + $0x50] sm:$0xff]
  %v62 = vld [vmem:[%s0 + $0x58] sm:$0xff]
  %v63 = vld [vmem:[%s0 + $0x60] sm:$0xff]
  %v64 = vld [vmem:[%s0 + $0x68] sm:$0xff]
  %v65 = vld [vmem:[%s0 + $0x70] sm:$0xff]
  %v66 = vld [vmem:[%s0 + $0x78] sm:$0xff]
  %v67 = vpack.c.bf16 %v52, %v51
  %v68 = vpack.c.bf16 %v54, %v53
  %v69 = vpack.c.bf16 %v56, %v55
  %v70 = vpack.c.bf16 %v58, %v57
  %v71 = vpack.c.bf16 %v60, %v59
  %v72 = vpack.c.bf16 %v62, %v61
  %v73 = vpack.c.bf16 %v64, %v63
  %v74 = vpack.c.bf16 %v66, %v65
  %v75 = vld [vmem:[%s1] sm:$0xf]
  %v76 = vld [vmem:[%s1 + $0x4] sm:$0xf]
  %v77 = vld [vmem:[%s1 + $0x8] sm:$0xf]
  %v78 = vld [vmem:[%s1 + $0xc] sm:$0xf]
  %v79 = vld [vmem:[%s1 + $0x10] sm:$0xf]
  %v80 = vld [vmem:[%s1 + $0x14] sm:$0xf]
  %v81 = vld [vmem:[%s1 + $0x18] sm:$0xf]
  %v82 = vld [vmem:[%s1 + $0x1c] sm:$0xf]
  %v83 = vld [vmem:[%s1 + $0x20] sm:$0xf]
  %v84 = vld [vmem:[%s1 + $0x24] sm:$0xf]
  %v85 = vld [vmem:[%s1 + $0x28] sm:$0xf]
  %v86 = vld [vmem:[%s1 + $0x2c] sm:$0xf]
  %v87 = vld [vmem:[%s1 + $0x30] sm:$0xf]
  %v88 = vld [vmem:[%s1 + $0x34] sm:$0xf]
  %v89 = vld [vmem:[%s1 + $0x38] sm:$0xf]
  %v90 = vld [vmem:[%s1 + $0x3c] sm:$0xf]
  %v107 = vunpack.c.l.b16 %v75
  %v108 = vunpack.c.l.b16 %v76
  %v109 = vunpack.c.l.b16 %v77
  %v110 = vunpack.c.l.b16 %v78
  %v111 = vunpack.c.l.b16 %v79
  %v112 = vunpack.c.l.b16 %v80
  %v113 = vunpack.c.l.b16 %v81
  %v114 = vunpack.c.l.b16 %v82
  %v115 = vunpack.c.l.b16 %v83
  %v116 = vunpack.c.l.b16 %v84
  %v117 = vunpack.c.l.b16 %v85
  %v118 = vunpack.c.l.b16 %v86
  %v119 = vunpack.c.l.b16 %v87
  %v120 = vunpack.c.l.b16 %v88
  %v121 = vunpack.c.l.b16 %v89
  %v122 = vunpack.c.l.b16 %v90
  %v123 = vpack.c.b16 %v108, %v107
  %v124 = vpack.c.b16 %v110, %v109
  %v125 = vpack.c.b16 %v112, %v111
  %v126 = vpack.c.b16 %v114, %v113
  %v127 = vpack.c.b16 %v116, %v115
  %v128 = vpack.c.b16 %v118, %v117
  %v129 = vpack.c.b16 %v120, %v119
  %v130 = vpack.c.b16 %v122, %v121
  %139 = vmatprep.subr.bf16.mxu0 0
  %140 = vmatpush1.bf16.msra.mxu0 %v123
  %141 = vmatprep.subr.bf16.mxu0 0
  %142 = vmatpush1.bf16.msra.mxu0 %v124
  %143 = vmatprep.subr.bf16.mxu0 0
  %144 = vmatpush1.bf16.msra.mxu0 %v125
  %145 = vmatprep.subr.bf16.mxu0 0
  %146 = vmatpush1.bf16.msra.mxu0 %v126
  %147 = vmatprep.subr.bf16.mxu0 0
  %148 = vmatpush1.bf16.msra.mxu0 %v127
  %149 = vmatprep.subr.bf16.mxu0 0
  %150 = vmatpush1.bf16.msra.mxu0 %v128
  %151 = vmatprep.subr.bf16.mxu0 0
  %152 = vmatpush1.bf16.msra.mxu0 %v129
  %153 = vmatprep.subr.bf16.mxu0 0
  %154 = vmatpush1.bf16.msra.mxu0 %v130
  %155 = vmatprep.subr.bf16.mxu0 0
  %156 = vmatpush1.bf16.msra.mxu0 0
  %157 = vmatprep.subr.bf16.mxu0 0
  %158 = vmatpush1.bf16.msra.mxu0 0
  %159 = vmatprep.subr.bf16.mxu0 0
  %160 = vmatpush1.bf16.msra.mxu0 0
  %161 = vmatprep.subr.bf16.mxu0 0
  %162 = vmatpush1.bf16.msra.mxu0 0
  %163 = vmatprep.subr.bf16.mxu0 0
  %164 = vmatpush1.bf16.msra.mxu0 0
  %165 = vmatprep.subr.bf16.mxu0 0
  %166 = vmatpush1.bf16.msra.mxu0 0
  %167 = vmatprep.subr.bf16.mxu0 0
  %168 = vmatpush1.bf16.msra.mxu0 0
  %169 = vmatprep.subr.bf16.mxu0 0
  %170 = vmatpush1.bf16.msra.mxu0 0
  %171 = vmatprep.mubr.bf16.mxu0 0
  %172 = vmatmul.mubr.bf16.gmra.mrb[0].mxu0 %v67
  %v173 = vpop.f32.mrb[0].mxu0
  %v174 = vadd.f32 0.0, %v173
  %v175 = vpop.f32.mrb[0].mxu0
  %v176 = vpop.f32.mrb[0].mxu0
  %v177 = vadd.f32 0.0, %v176
  %v178 = vpop.f32.mrb[0].mxu0
  %179 = vmatprep.mubr.bf16.mxu0 0
  %180 = vmatmul.mubr.bf16.gmra.mrb[0].mxu0 %v68
  %v181 = vpop.f32.mrb[0].mxu0
  %v182 = vadd.f32 0.0, %v181
  %v183 = vpop.f32.mrb[0].mxu0
  %v184 = vpop.f32.mrb[0].mxu0
  %v185 = vadd.f32 0.0, %v184
  %v186 = vpop.f32.mrb[0].mxu0
  %187 = vmatprep.mubr.bf16.mxu0 0
  %188 = vmatmul.mubr.bf16.gmra.mrb[0].mxu0 %v69
  %v189 = vpop.f32.mrb[0].mxu0
  %v190 = vadd.f32 0.0, %v189
  %v191 = vpop.f32.mrb[0].mxu0
  %v192 = vpop.f32.mrb[0].mxu0
  %v193 = vadd.f32 0.0, %v192
  %v194 = vpop.f32.mrb[0].mxu0
  %195 = vmatprep.mubr.bf16.mxu0 0
  %196 = vmatmul.mubr.bf16.gmra.mrb[0].mxu0 %v70
  %v197 = vpop.f32.mrb[0].mxu0
  %v198 = vadd.f32 0.0, %v197
  %v199 = vpop.f32.mrb[0].mxu0
  %v200 = vpop.f32.mrb[0].mxu0
  %v201 = vadd.f32 0.0, %v200
  %v202 = vpop.f32.mrb[0].mxu0
  %203 = vmatprep.mubr.bf16.mxu0 0
  %204 = vmatmul.mubr.bf16.gmra.mrb[0].mxu0 %v71
  %v205 = vpop.f32.mrb[0].mxu0
  %v206 = vadd.f32 0.0, %v205
  %v207 = vpop.f32.mrb[0].mxu0
  %v208 = vpop.f32.mrb[0].mxu0
  %v209 = vadd.f32 0.0, %v208
  %v210 = vpop.f32.mrb[0].mxu0
  %211 = vmatprep.mubr.bf16.mxu0 0
  %212 = vmatmul.mubr.bf16.gmra.mrb[0].mxu0 %v72
  %v213 = vpop.f32.mrb[0].mxu0
  %v214 = vadd.f32 0.0, %v213
  %v215 = vpop.f32.mrb[0].mxu0
  %v216 = vpop.f32.mrb[0].mxu0
  %v217 = vadd.f32 0.0, %v216
  %v218 = vpop.f32.mrb[0].mxu0
  %219 = vmatprep.mubr.bf16.mxu0 0
  %220 = vmatmul.mubr.bf16.gmra.mrb[0].mxu0 %v73
  %v221 = vpop.f32.mrb[0].mxu0
  %v222 = vadd.f32 0.0, %v221
  %v223 = vpop.f32.mrb[0].mxu0
  %v224 = vpop.f32.mrb[0].mxu0
  %v225 = vadd.f32 0.0, %v224
  %v226 = vpop.f32.mrb[0].mxu0
  %227 = vmatprep.mubr.bf16.mxu0 0
  %228 = vmatmul.mubr.bf16.gmra.mrb[0].mxu0 %v74
  %v229 = vpop.f32.mrb[0].mxu0
  %v230 = vadd.f32 0.0, %v229
  %v231 = vpop.f32.mrb[0].mxu0
  %v232 = vpop.f32.mrb[0].mxu0
  %v233 = vadd.f32 0.0, %v232
  %v234 = vpop.f32.mrb[0].mxu0
  %235 = vdwg.mxu0
  %v236 = vadd.f32 %v35, %v174
  %v237 = vadd.f32 %v36, %v177
  %v238 = vadd.f32 %v37, %v182
  %v239 = vadd.f32 %v38, %v185
  %v240 = vadd.f32 %v39, %v190
  %v241 = vadd.f32 %v40, %v193
  %v242 = vadd.f32 %v41, %v198
  %v243 = vadd.f32 %v42, %v201
  %v244 = vadd.f32 %v43, %v206
  %v245 = vadd.f32 %v44, %v209
  %v246 = vadd.f32 %v45, %v214
  %v247 = vadd.f32 %v46, %v217
  %v248 = vadd.f32 %v47, %v222
  %v249 = vadd.f32 %v48, %v225
  %v250 = vadd.f32 %v49, %v230
  %v251 = vadd.f32 %v50, %v233
  %252 = vst [vmem:[#allocation2] sm:$0xff] %v236
  %253 = vst [vmem:[#allocation2 + $0x8] sm:$0xff] %v237
  %254 = vst [vmem:[#allocation2 + $0x10] sm:$0xff] %v238
  %255 = vst [vmem:[#allocation2 + $0x18] sm:$0xff] %v239
  %256 = vst [vmem:[#allocation2 + $0x20] sm:$0xff] %v240
  %257 = vst [vmem:[#allocation2 + $0x28] sm:$0xff] %v241
  %258 = vst [vmem:[#allocation2 + $0x30] sm:$0xff] %v242
  %259 = vst [vmem:[#allocation2 + $0x38] sm:$0xff] %v243
  %260 = vst [vmem:[#allocation2 + $0x40] sm:$0xff] %v244
  %261 = vst [vmem:[#allocation2 + $0x48] sm:$0xff] %v245
  %262 = vst [vmem:[#allocation2 + $0x50] sm:$0xff] %v246
  %263 = vst [vmem:[#allocation2 + $0x58] sm:$0xff] %v247
  %264 = vst [vmem:[#allocation2 + $0x60] sm:$0xff] %v248
  %265 = vst [vmem:[#allocation2 + $0x68] sm:$0xff] %v249
  %266 = vst [vmem:[#allocation2 + $0x70] sm:$0xff] %v250
  %267 = vst [vmem:[#allocation2 + $0x78] sm:$0xff] %v251
  // Predicated region
  $region18: #{graph_autoencoder_forward.6} parent=0 // pred_check
    %p268 = pneg %p15
  $region19: #{graph_autoencoder_forward.6} parent=0 // pred_check_branch
    %270 = sbr.rel (%p268) target = $region21
  $region20: #{graph_autoencoder_forward.6} parent=0 // pred_region
    %v271 = vld [vmem:[#allocation2] sm:$0xff]
    %v272 = vld [vmem:[#allocation2 + $0x8] sm:$0xff]
    %v273 = vld [vmem:[#allocation2 + $0x10] sm:$0xff]
    %v274 = vld [vmem:[#allocation2 + $0x18] sm:$0xff]
    %v275 = vld [vmem:[#allocation2 + $0x20] sm:$0xff]
    %v276 = vld [vmem:[#allocation2 + $0x28] sm:$0xff]
    %v277 = vld [vmem:[#allocation2 + $0x30] sm:$0xff]
    %v278 = vld [vmem:[#allocation2 + $0x38] sm:$0xff]
    %v279 = vld [vmem:[#allocation2 + $0x40] sm:$0xff]
    %v280 = vld [vmem:[#allocation2 + $0x48] sm:$0xff]
    %v281 = vld [vmem:[#allocation2 + $0x50] sm:$0xff]
    %v282 = vld [vmem:[#allocation2 + $0x58] sm:$0xff]
    %v283 = vld [vmem:[#allocation2 + $0x60] sm:$0xff]
    %v284 = vld [vmem:[#allocation2 + $0x68] sm:$0xff]
    %v285 = vld [vmem:[#allocation2 + $0x70] sm:$0xff]
    %v286 = vld [vmem:[#allocation2 + $0x78] sm:$0xff]
    %v287 = vld [vmem:[%s2] sm:$0x1]
    %v289 = vlaneseq
    %v290 = vshrl.u32 %v289, 7
    %v291 = vsub.s32 0, %v290
    %v292 = vrot.slane %v287, %v291
    %v294 = vadd.f32 %v271, %v292
    %v295 = vadd.f32 %v272, %v292
    %v296 = vadd.f32 %v273, %v292
    %v297 = vadd.f32 %v274, %v292
    %v298 = vadd.f32 %v275, %v292
    %v299 = vadd.f32 %v276, %v292
    %v300 = vadd.f32 %v277, %v292
    %v301 = vadd.f32 %v278, %v292
    %v302 = vadd.f32 %v279, %v292
    %v303 = vadd.f32 %v280, %v292
    %v304 = vadd.f32 %v281, %v292
    %v305 = vadd.f32 %v282, %v292
    %v306 = vadd.f32 %v283, %v292
    %v307 = vadd.f32 %v284, %v292
    %v308 = vadd.f32 %v285, %v292
    %v309 = vadd.f32 %v286, %v292
    %v310 = vpack.c.bf16 %v295, %v294
    %v311 = vpack.c.bf16 %v297, %v296
    %v312 = vpack.c.bf16 %v299, %v298
    %v313 = vpack.c.bf16 %v301, %v300
    %v314 = vpack.c.bf16 %v303, %v302
    %v315 = vpack.c.bf16 %v305, %v304
    %v316 = vpack.c.bf16 %v307, %v306
    %v317 = vpack.c.bf16 %v309, %v308
    %v326 = vunpack.c.l.b16 %v310
    %v327 = vunpack.c.h.b16 %v310
    %v328 = vunpack.c.l.b16 %v311
    %v329 = vunpack.c.h.b16 %v311
    %v330 = vunpack.c.l.b16 %v312
    %v331 = vunpack.c.h.b16 %v312
    %v332 = vunpack.c.l.b16 %v313
    %v333 = vunpack.c.h.b16 %v313
    %v334 = vunpack.c.l.b16 %v314
    %v335 = vunpack.c.h.b16 %v314
    %v336 = vunpack.c.l.b16 %v315
    %v337 = vunpack.c.h.b16 %v315
    %v338 = vunpack.c.l.b16 %v316
    %v339 = vunpack.c.h.b16 %v316
    %v340 = vunpack.c.l.b16 %v317
    %v341 = vunpack.c.h.b16 %v317
    %v342 = vpack.c.b16 %v326, %v326
    %v343 = vpack.c.b16 %v327, %v327
    %v344 = vpack.c.b16 %v328, %v328
    %v345 = vpack.c.b16 %v329, %v329
    %v346 = vpack.c.b16 %v330, %v330
    %v347 = vpack.c.b16 %v331, %v331
    %v348 = vpack.c.b16 %v332, %v332
    %v349 = vpack.c.b16 %v333, %v333
    %v350 = vpack.c.b16 %v334, %v334
    %v351 = vpack.c.b16 %v335, %v335
    %v352 = vpack.c.b16 %v336, %v336
    %v353 = vpack.c.b16 %v337, %v337
    %v354 = vpack.c.b16 %v338, %v338
    %v355 = vpack.c.b16 %v339, %v339
    %v356 = vpack.c.b16 %v340, %v340
    %v357 = vpack.c.b16 %v341, %v341
    %374 = vst [vmem:[%s3] sm:$0xf] %v342
    %375 = vst [vmem:[%s3 + $0x4] sm:$0xf] %v343
    %376 = vst [vmem:[%s3 + $0x8] sm:$0xf] %v344
    %377 = vst [vmem:[%s3 + $0xc] sm:$0xf] %v345
    %378 = vst [vmem:[%s3 + $0x10] sm:$0xf] %v346
    %379 = vst [vmem:[%s3 + $0x14] sm:$0xf] %v347
    %380 = vst [vmem:[%s3 + $0x18] sm:$0xf] %v348
    %381 = vst [vmem:[%s3 + $0x1c] sm:$0xf] %v349
    %382 = vst [vmem:[%s3 + $0x20] sm:$0xf] %v350
    %383 = vst [vmem:[%s3 + $0x24] sm:$0xf] %v351
    %384 = vst [vmem:[%s3 + $0x28] sm:$0xf] %v352
    %385 = vst [vmem:[%s3 + $0x2c] sm:$0xf] %v353
    %386 = vst [vmem:[%s3 + $0x30] sm:$0xf] %v354
    %387 = vst [vmem:[%s3 + $0x34] sm:$0xf] %v355
    %388 = vst [vmem:[%s3 + $0x38] sm:$0xf] %v356
    %389 = vst [vmem:[%s3 + $0x3c] sm:$0xf] %v357
  $region21: #{graph_autoencoder_forward.6} parent=0 // pred_fallthru
    _
  // Predicated region
  $region22: #{graph_autoencoder_forward.6} parent=0 // pred_check
    _
  $region23: #{graph_autoencoder_forward.6} parent=0 // pred_check_branch
    %391 = sbr.rel (0) target = $region25
  $region24: #{graph_autoencoder_forward.6} parent=0 // pred_region
    _
  $region25: #{graph_autoencoder_forward.6} parent=0 // pred_fallthru
    _
  // Predicated region
  $region26: #{graph_autoencoder_forward.6} parent=0 // pred_check
    _
  $region27: #{graph_autoencoder_forward.6} parent=0 // pred_check_branch
    %393 = sbr.rel (0) target = $region29
  $region28: #{graph_autoencoder_forward.6} parent=0 // pred_region
    _
  $region29: #{graph_autoencoder_forward.6} parent=0 // pred_fallthru
    _

// kernel: graph_autoencoder_forward.4
$region0: #{graph_autoencoder_forward.4}
  #allocation0 [shape = 'u32[]', space=smem, size = 0x4, offset = 0x4, fixed_abs, tag = 'smem constant byte address 0x4 - core index']
  #allocation1 [shape = 'u32[144,128]{1,0:T(1,128)}', space=vmem, size = 0x12000, scoped, tag = 'internal scratch']
  %s0 = inlined_call_operand.vmem [shape: bf16[128,64], index: 0, kind: input, shape index: {}]
  %s1 = inlined_call_operand.vmem [shape: bf16[64,128], index: 1, kind: input, shape index: {}]
  %s2 = inlined_call_operand.vmem [shape: bf16[128,128], index: 2, kind: output, shape index: {}]
  %s3 = sld [smem:[#allocation0]]
  $region18: #{graph_autoencoder_forward.4} parent=0
    _
  %s5 = ssub.s32 1, %s3
  %s6 = scalar_select 0, %s5, %s3
  // Predicated region
  $region2: #{graph_autoencoder_forward.4} parent=0 // pred_check
    _
  $region3: #{graph_autoencoder_forward.4} parent=0 // pred_check_branch
    %8 = sbr.rel (0) target = $region5
  $region4: #{graph_autoencoder_forward.4} parent=0 // pred_region
    _
  $region5: #{graph_autoencoder_forward.4} parent=0 // pred_fallthru
    _
  // Predicated region
  $region6: #{graph_autoencoder_forward.4} parent=0 // pred_check
    _
  $region7: #{graph_autoencoder_forward.4} parent=0 // pred_check_branch
    %10 = sbr.rel (0) target = $region9
  $region8: #{graph_autoencoder_forward.4} parent=0 // pred_region
    _
  $region9: #{graph_autoencoder_forward.4} parent=0 // pred_fallthru
    _
  %v12 = vld [vmem:[%s0] sm:$0xf]
  %v13 = vld [vmem:[%s0 + $0x4] sm:$0xf]
  %v14 = vld [vmem:[%s0 + $0x8] sm:$0xf]
  %v15 = vld [vmem:[%s0 + $0xc] sm:$0xf]
  %v16 = vld [vmem:[%s0 + $0x10] sm:$0xf]
  %v17 = vld [vmem:[%s0 + $0x14] sm:$0xf]
  %v18 = vld [vmem:[%s0 + $0x18] sm:$0xf]
  %v19 = vld [vmem:[%s0 + $0x1c] sm:$0xf]
  %v20 = vld [vmem:[%s0 + $0x20] sm:$0xf]
  %v21 = vld [vmem:[%s0 + $0x24] sm:$0xf]
  %v22 = vld [vmem:[%s0 + $0x28] sm:$0xf]
  %v23 = vld [vmem:[%s0 + $0x2c] sm:$0xf]
  %v24 = vld [vmem:[%s0 + $0x30] sm:$0xf]
  %v25 = vld [vmem:[%s0 + $0x34] sm:$0xf]
  %v26 = vld [vmem:[%s0 + $0x38] sm:$0xf]
  %v27 = vld [vmem:[%s0 + $0x3c] sm:$0xf]
  %v28 = vld [vmem:[%s1] sm:$0xf]
  %v29 = vld [vmem:[%s1 + $0x4] sm:$0xf]
  %v30 = vld [vmem:[%s1 + $0x8] sm:$0xf]
  %v31 = vld [vmem:[%s1 + $0xc] sm:$0xf]
  %v32 = vld [vmem:[%s1 + $0x10] sm:$0xf]
  %v33 = vld [vmem:[%s1 + $0x14] sm:$0xf]
  %v34 = vld [vmem:[%s1 + $0x18] sm:$0xf]
  %v35 = vld [vmem:[%s1 + $0x1c] sm:$0xf]
  %v52 = vunpack.c.l.b16 %v12
  %v53 = vunpack.c.l.b16 %v13
  %v54 = vunpack.c.l.b16 %v14
  %v55 = vunpack.c.l.b16 %v15
  %v56 = vunpack.c.l.b16 %v16
  %v57 = vunpack.c.l.b16 %v17
  %v58 = vunpack.c.l.b16 %v18
  %v59 = vunpack.c.l.b16 %v19
  %v60 = vunpack.c.l.b16 %v20
  %v61 = vunpack.c.l.b16 %v21
  %v62 = vunpack.c.l.b16 %v22
  %v63 = vunpack.c.l.b16 %v23
  %v64 = vunpack.c.l.b16 %v24
  %v65 = vunpack.c.l.b16 %v25
  %v66 = vunpack.c.l.b16 %v26
  %v67 = vunpack.c.l.b16 %v27
  %v68 = vpack.c.b16 %v53, %v52
  %v69 = vpack.c.b16 %v55, %v54
  %v70 = vpack.c.b16 %v57, %v56
  %v71 = vpack.c.b16 %v59, %v58
  %v72 = vpack.c.b16 %v61, %v60
  %v73 = vpack.c.b16 %v63, %v62
  %v74 = vpack.c.b16 %v65, %v64
  %v75 = vpack.c.b16 %v67, %v66
  %v84 = vunpack.c.l.b16 %v28
  %v85 = vunpack.c.l.b16 %v29
  %v86 = vunpack.c.l.b16 %v30
  %v87 = vunpack.c.l.b16 %v31
  %v88 = vunpack.c.l.b16 %v32
  %v89 = vunpack.c.l.b16 %v33
  %v90 = vunpack.c.l.b16 %v34
  %v91 = vunpack.c.l.b16 %v35
  %v92 = vpack.c.b16 %v85, %v84
  %v93 = vpack.c.b16 %v87, %v86
  %v94 = vpack.c.b16 %v89, %v88
  %v95 = vpack.c.b16 %v91, %v90
  %vm100 = vcmask 523264
  %v102 = vsel %vm100, %v68, 0
  %v105 = vsel %vm100, %v69, 0
  %v108 = vsel %vm100, %v70, 0
  %v111 = vsel %vm100, %v71, 0
  %v114 = vsel %vm100, %v72, 0
  %v117 = vsel %vm100, %v73, 0
  %v120 = vsel %vm100, %v74, 0
  %v123 = vsel %vm100, %v75, 0
  %125 = vmatprep.subr.bf16.mxu0 0
  %126 = vmatpush1.bf16.msra.mxu0 %v92
  %127 = vmatprep.subr.bf16.mxu0 0
  %128 = vmatpush1.bf16.msra.mxu0 %v93
  %129 = vmatprep.subr.bf16.mxu0 0
  %130 = vmatpush1.bf16.msra.mxu0 %v94
  %131 = vmatprep.subr.bf16.mxu0 0
  %132 = vmatpush1.bf16.msra.mxu0 %v95
  %133 = vmatprep.subr.bf16.mxu0 0
  %134 = vmatpush1.bf16.msra.mxu0 0
  %135 = vmatprep.subr.bf16.mxu0 0
  %136 = vmatpush1.bf16.msra.mxu0 0
  %137 = vmatprep.subr.bf16.mxu0 0
  %138 = vmatpush1.bf16.msra.mxu0 0
  %139 = vmatprep.subr.bf16.mxu0 0
  %140 = vmatpush1.bf16.msra.mxu0 0
  %141 = vmatprep.subr.bf16.mxu0 0
  %142 = vmatpush1.bf16.msra.mxu0 0
  %143 = vmatprep.subr.bf16.mxu0 0
  %144 = vmatpush1.bf16.msra.mxu0 0
  %145 = vmatprep.subr.bf16.mxu0 0
  %146 = vmatpush1.bf16.msra.mxu0 0
  %147 = vmatprep.subr.bf16.mxu0 0
  %148 = vmatpush1.bf16.msra.mxu0 0
  %149 = vmatprep.subr.bf16.mxu0 0
  %150 = vmatpush1.bf16.msra.mxu0 0
  %151 = vmatprep.subr.bf16.mxu0 0
  %152 = vmatpush1.bf16.msra.mxu0 0
  %153 = vmatprep.subr.bf16.mxu0 0
  %154 = vmatpush1.bf16.msra.mxu0 0
  %155 = vmatprep.subr.bf16.mxu0 0
  %156 = vmatpush1.bf16.msra.mxu0 0
  %157 = vmatprep.mubr.bf16.mxu0 0
  %158 = vmatmul.mubr.bf16.gmra.mrb[0].mxu0 %v102
  %v159 = vpop.f32.mrb[0].mxu0
  %v160 = vadd.f32 0.0, %v159
  %v161 = vpop.f32.mrb[0].mxu0
  %v162 = vpop.f32.mrb[0].mxu0
  %v163 = vadd.f32 0.0, %v162
  %v164 = vpop.f32.mrb[0].mxu0
  %165 = vmatprep.mubr.bf16.mxu0 0
  %166 = vmatmul.mubr.bf16.gmra.mrb[0].mxu0 %v105
  %v167 = vpop.f32.mrb[0].mxu0
  %v168 = vadd.f32 0.0, %v167
  %v169 = vpop.f32.mrb[0].mxu0
  %v170 = vpop.f32.mrb[0].mxu0
  %v171 = vadd.f32 0.0, %v170
  %v172 = vpop.f32.mrb[0].mxu0
  %173 = vmatprep.mubr.bf16.mxu0 0
  %174 = vmatmul.mubr.bf16.gmra.mrb[0].mxu0 %v108
  %v175 = vpop.f32.mrb[0].mxu0
  %v176 = vadd.f32 0.0, %v175
  %v177 = vpop.f32.mrb[0].mxu0
  %v178 = vpop.f32.mrb[0].mxu0
  %v179 = vadd.f32 0.0, %v178
  %v180 = vpop.f32.mrb[0].mxu0
  %181 = vmatprep.mubr.bf16.mxu0 0
  %182 = vmatmul.mubr.bf16.gmra.mrb[0].mxu0 %v111
  %v183 = vpop.f32.mrb[0].mxu0
  %v184 = vadd.f32 0.0, %v183
  %v185 = vpop.f32.mrb[0].mxu0
  %v186 = vpop.f32.mrb[0].mxu0
  %v187 = vadd.f32 0.0, %v186
  %v188 = vpop.f32.mrb[0].mxu0
  %189 = vmatprep.mubr.bf16.mxu0 0
  %190 = vmatmul.mubr.bf16.gmra.mrb[0].mxu0 %v114
  %v191 = vpop.f32.mrb[0].mxu0
  %v192 = vadd.f32 0.0, %v191
  %v193 = vpop.f32.mrb[0].mxu0
  %v194 = vpop.f32.mrb[0].mxu0
  %v195 = vadd.f32 0.0, %v194
  %v196 = vpop.f32.mrb[0].mxu0
  %197 = vmatprep.mubr.bf16.mxu0 0
  %198 = vmatmul.mubr.bf16.gmra.mrb[0].mxu0 %v117
  %v199 = vpop.f32.mrb[0].mxu0
  %v200 = vadd.f32 0.0, %v199
  %v201 = vpop.f32.mrb[0].mxu0
  %v202 = vpop.f32.mrb[0].mxu0
  %v203 = vadd.f32 0.0, %v202
  %v204 = vpop.f32.mrb[0].mxu0
  %205 = vmatprep.mubr.bf16.mxu0 0
  %206 = vmatmul.mubr.bf16.gmra.mrb[0].mxu0 %v120
  %v207 = vpop.f32.mrb[0].mxu0
  %v208 = vadd.f32 0.0, %v207
  %v209 = vpop.f32.mrb[0].mxu0
  %v210 = vpop.f32.mrb[0].mxu0
  %v211 = vadd.f32 0.0, %v210
  %v212 = vpop.f32.mrb[0].mxu0
  %213 = vmatprep.mubr.bf16.mxu0 0
  %214 = vmatmul.mubr.bf16.gmra.mrb[0].mxu0 %v123
  %v215 = vpop.f32.mrb[0].mxu0
  %v216 = vadd.f32 0.0, %v215
  %v217 = vpop.f32.mrb[0].mxu0
  %v218 = vpop.f32.mrb[0].mxu0
  %v219 = vadd.f32 0.0, %v218
  %v220 = vpop.f32.mrb[0].mxu0
  %221 = vdwg.mxu0
  %v222 = vpack.c.bf16 %v163, %v160
  %v223 = vpack.c.bf16 %v171, %v168
  %v224 = vpack.c.bf16 %v179, %v176
  %v225 = vpack.c.bf16 %v187, %v184
  %v226 = vpack.c.bf16 %v195, %v192
  %v227 = vpack.c.bf16 %v203, %v200
  %v228 = vpack.c.bf16 %v211, %v208
  %v229 = vpack.c.bf16 %v219, %v216
  %v238 = vunpack.c.l.b16 %v222
  %v239 = vunpack.c.h.b16 %v222
  %v240 = vunpack.c.l.b16 %v223
  %v241 = vunpack.c.h.b16 %v223
  %v242 = vunpack.c.l.b16 %v224
  %v243 = vunpack.c.h.b16 %v224
  %v244 = vunpack.c.l.b16 %v225
  %v245 = vunpack.c.h.b16 %v225
  %v246 = vunpack.c.l.b16 %v226
  %v247 = vunpack.c.h.b16 %v226
  %v248 = vunpack.c.l.b16 %v227
  %v249 = vunpack.c.h.b16 %v227
  %v250 = vunpack.c.l.b16 %v228
  %v251 = vunpack.c.h.b16 %v228
  %v252 = vunpack.c.l.b16 %v229
  %v253 = vunpack.c.h.b16 %v229
  %v254 = vpack.c.b16 %v238, %v238
  %v255 = vpack.c.b16 %v239, %v239
  %v256 = vpack.c.b16 %v240, %v240
  %v257 = vpack.c.b16 %v241, %v241
  %v258 = vpack.c.b16 %v242, %v242
  %v259 = vpack.c.b16 %v243, %v243
  %v260 = vpack.c.b16 %v244, %v244
  %v261 = vpack.c.b16 %v245, %v245
  %v262 = vpack.c.b16 %v246, %v246
  %v263 = vpack.c.b16 %v247, %v247
  %v264 = vpack.c.b16 %v248, %v248
  %v265 = vpack.c.b16 %v249, %v249
  %v266 = vpack.c.b16 %v250, %v250
  %v267 = vpack.c.b16 %v251, %v251
  %v268 = vpack.c.b16 %v252, %v252
  %v269 = vpack.c.b16 %v253, %v253
  %286 = vst [vmem:[%s2] sm:$0xf] %v254
  %287 = vst [vmem:[%s2 + $0x4] sm:$0xf] %v255
  %288 = vst [vmem:[%s2 + $0x8] sm:$0xf] %v256
  %289 = vst [vmem:[%s2 + $0xc] sm:$0xf] %v257
  %290 = vst [vmem:[%s2 + $0x10] sm:$0xf] %v258
  %291 = vst [vmem:[%s2 + $0x14] sm:$0xf] %v259
  %292 = vst [vmem:[%s2 + $0x18] sm:$0xf] %v260
  %293 = vst [vmem:[%s2 + $0x1c] sm:$0xf] %v261
  %294 = vst [vmem:[%s2 + $0x20] sm:$0xf] %v262
  %295 = vst [vmem:[%s2 + $0x24] sm:$0xf] %v263
  %296 = vst [vmem:[%s2 + $0x28] sm:$0xf] %v264
  %297 = vst [vmem:[%s2 + $0x2c] sm:$0xf] %v265
  %298 = vst [vmem:[%s2 + $0x30] sm:$0xf] %v266
  %299 = vst [vmem:[%s2 + $0x34] sm:$0xf] %v267
  %300 = vst [vmem:[%s2 + $0x38] sm:$0xf] %v268
  %301 = vst [vmem:[%s2 + $0x3c] sm:$0xf] %v269
  // Predicated region
  $region10: #{graph_autoencoder_forward.4} parent=0 // pred_check
    _
  $region11: #{graph_autoencoder_forward.4} parent=0 // pred_check_branch
    %303 = sbr.rel (0) target = $region13
  $region12: #{graph_autoencoder_forward.4} parent=0 // pred_region
    _
  $region13: #{graph_autoencoder_forward.4} parent=0 // pred_fallthru
    _
  // Predicated region
  $region14: #{graph_autoencoder_forward.4} parent=0 // pred_check
    _
  $region15: #{graph_autoencoder_forward.4} parent=0 // pred_check_branch
    %305 = sbr.rel (0) target = $region17
  $region16: #{graph_autoencoder_forward.4} parent=0 // pred_region
    _
  $region17: #{graph_autoencoder_forward.4} parent=0 // pred_fallthru
    _

// kernel: graph_autoencoder_forward.5
$region0: #{graph_autoencoder_forward.5}
  #allocation0 [shape = 'u32[]', space=smem, size = 0x4, offset = 0x4, fixed_abs, tag = 'smem constant byte address 0x4 - core index']
  #allocation1 [shape = 'u32[144,128]{1,0:T(1,128)}', space=vmem, size = 0x12000, scoped, tag = 'internal scratch']
  #allocation2 [shape = 'f32[128,128]{1,0:T(8,128)}', space=vmem, size = 0x10000, scoped, tag = 'scratch operand']
  %s0 = inlined_call_operand.vmem [shape: f32[128,128], index: 0, kind: input, shape index: {}]
  %s1 = inlined_call_operand.vmem [shape: bf16[128,128], index: 1, kind: input, shape index: {}]
  %s2 = inlined_call_operand.vmem [shape: f32[1,128], index: 2, kind: input, shape index: {}]
  %s3 = inlined_call_operand.vmem [shape: bf16[128,128], index: 3, kind: input, shape index: {}]
  %s4 = inlined_call_operand.vmem [shape: bf16[128,128], index: 4, kind: output, shape index: {}]
  %s5 = sld [smem:[#allocation0]]
  $region34: #{graph_autoencoder_forward.5} parent=0
    _
  %s7 = ssub.s32 1, %s5
  %s8 = scalar_select 0, %s7, %s5
  // Predicated region
  $region2: #{graph_autoencoder_forward.5} parent=0 // pred_check
    _
  $region3: #{graph_autoencoder_forward.5} parent=0 // pred_check_branch
    %10 = sbr.rel (0) target = $region5
  $region4: #{graph_autoencoder_forward.5} parent=0 // pred_region
    _
  $region5: #{graph_autoencoder_forward.5} parent=0 // pred_fallthru
    _
  // Predicated region
  $region6: #{graph_autoencoder_forward.5} parent=0 // pred_check
    _
  $region7: #{graph_autoencoder_forward.5} parent=0 // pred_check_branch
    %12 = sbr.rel (0) target = $region9
  $region8: #{graph_autoencoder_forward.5} parent=0 // pred_region
    _
  $region9: #{graph_autoencoder_forward.5} parent=0 // pred_fallthru
    _
  // Predicated region
  $region10: #{graph_autoencoder_forward.5} parent=0 // pred_check
    _
  $region11: #{graph_autoencoder_forward.5} parent=0 // pred_check_branch
    %14 = sbr.rel (0) target = $region13
  $region12: #{graph_autoencoder_forward.5} parent=0 // pred_region
    _
  $region13: #{graph_autoencoder_forward.5} parent=0 // pred_fallthru
    _
  // Predicated region
  $region14: #{graph_autoencoder_forward.5} parent=0 // pred_check
    _
  $region15: #{graph_autoencoder_forward.5} parent=0 // pred_check_branch
    %16 = sbr.rel (0) target = $region17
  $region16: #{graph_autoencoder_forward.5} parent=0 // pred_region
    _
  $region17: #{graph_autoencoder_forward.5} parent=0 // pred_fallthru
    _
  %p18 = scmp.eq.s32.totalorder 0, 0
  // Predicated region
  $region18: #{graph_autoencoder_forward.5} parent=0 // pred_check
    %p19 = pneg %p18
  $region19: #{graph_autoencoder_forward.5} parent=0 // pred_check_branch
    %21 = sbr.rel (%p19) target = $region21
  $region20: #{graph_autoencoder_forward.5} parent=0 // pred_region
    %22 = vst [vmem:[#allocation2] sm:$0xff] 0.0
    %23 = vst [vmem:[#allocation2 + $0x8] sm:$0xff] 0.0
    %24 = vst [vmem:[#allocation2 + $0x10] sm:$0xff] 0.0
    %25 = vst [vmem:[#allocation2 + $0x18] sm:$0xff] 0.0
    %26 = vst [vmem:[#allocation2 + $0x20] sm:$0xff] 0.0
    %27 = vst [vmem:[#allocation2 + $0x28] sm:$0xff] 0.0
    %28 = vst [vmem:[#allocation2 + $0x30] sm:$0xff] 0.0
    %29 = vst [vmem:[#allocation2 + $0x38] sm:$0xff] 0.0
    %30 = vst [vmem:[#allocation2 + $0x40] sm:$0xff] 0.0
    %31 = vst [vmem:[#allocation2 + $0x48] sm:$0xff] 0.0
    %32 = vst [vmem:[#allocation2 + $0x50] sm:$0xff] 0.0
    %33 = vst [vmem:[#allocation2 + $0x58] sm:$0xff] 0.0
    %34 = vst [vmem:[#allocation2 + $0x60] sm:$0xff] 0.0
    %35 = vst [vmem:[#allocation2 + $0x68] sm:$0xff] 0.0
    %36 = vst [vmem:[#allocation2 + $0x70] sm:$0xff] 0.0
    %37 = vst [vmem:[#allocation2 + $0x78] sm:$0xff] 0.0
  $region21: #{graph_autoencoder_forward.5} parent=0 // pred_fallthru
    _
  %v38 = vld [vmem:[#allocation2] sm:$0xff]
  %v39 = vld [vmem:[#allocation2 + $0x8] sm:$0xff]
  %v40 = vld [vmem:[#allocation2 + $0x10] sm:$0xff]
  %v41 = vld [vmem:[#allocation2 + $0x18] sm:$0xff]
  %v42 = vld [vmem:[#allocation2 + $0x20] sm:$0xff]
  %v43 = vld [vmem:[#allocation2 + $0x28] sm:$0xff]
  %v44 = vld [vmem:[#allocation2 + $0x30] sm:$0xff]
  %v45 = vld [vmem:[#allocation2 + $0x38] sm:$0xff]
  %v46 = vld [vmem:[#allocation2 + $0x40] sm:$0xff]
  %v47 = vld [vmem:[#allocation2 + $0x48] sm:$0xff]
  %v48 = vld [vmem:[#allocation2 + $0x50] sm:$0xff]
  %v49 = vld [vmem:[#allocation2 + $0x58] sm:$0xff]
  %v50 = vld [vmem:[#allocation2 + $0x60] sm:$0xff]
  %v51 = vld [vmem:[#allocation2 + $0x68] sm:$0xff]
  %v52 = vld [vmem:[#allocation2 + $0x70] sm:$0xff]
  %v53 = vld [vmem:[#allocation2 + $0x78] sm:$0xff]
  %v54 = vld [vmem:[%s0] sm:$0xff]
  %v55 = vld [vmem:[%s0 + $0x8] sm:$0xff]
  %v56 = vld [vmem:[%s0 + $0x10] sm:$0xff]
  %v57 = vld [vmem:[%s0 + $0x18] sm:$0xff]
  %v58 = vld [vmem:[%s0 + $0x20] sm:$0xff]
  %v59 = vld [vmem:[%s0 + $0x28] sm:$0xff]
  %v60 = vld [vmem:[%s0 + $0x30] sm:$0xff]
  %v61 = vld [vmem:[%s0 + $0x38] sm:$0xff]
  %v62 = vld [vmem:[%s0 + $0x40] sm:$0xff]
  %v63 = vld [vmem:[%s0 + $0x48] sm:$0xff]
  %v64 = vld [vmem:[%s0 + $0x50] sm:$0xff]
  %v65 = vld [vmem:[%s0 + $0x58] sm:$0xff]
  %v66 = vld [vmem:[%s0 + $0x60] sm:$0xff]
  %v67 = vld [vmem:[%s0 + $0x68] sm:$0xff]
  %v68 = vld [vmem:[%s0 + $0x70] sm:$0xff]
  %v69 = vld [vmem:[%s0 + $0x78] sm:$0xff]
  %v70 = vpack.c.bf16 %v55, %v54
  %v71 = vpack.c.bf16 %v57, %v56
  %v72 = vpack.c.bf16 %v59, %v58
  %v73 = vpack.c.bf16 %v61, %v60
  %v74 = vpack.c.bf16 %v63, %v62
  %v75 = vpack.c.bf16 %v65, %v64
  %v76 = vpack.c.bf16 %v67, %v66
  %v77 = vpack.c.bf16 %v69, %v68
  %v78 = vld [vmem:[%s1] sm:$0xf]
  %v79 = vld [vmem:[%s1 + $0x4] sm:$0xf]
  %v80 = vld [vmem:[%s1 + $0x8] sm:$0xf]
  %v81 = vld [vmem:[%s1 + $0xc] sm:$0xf]
  %v82 = vld [vmem:[%s1 + $0x10] sm:$0xf]
  %v83 = vld [vmem:[%s1 + $0x14] sm:$0xf]
  %v84 = vld [vmem:[%s1 + $0x18] sm:$0xf]
  %v85 = vld [vmem:[%s1 + $0x1c] sm:$0xf]
  %v86 = vld [vmem:[%s1 + $0x20] sm:$0xf]
  %v87 = vld [vmem:[%s1 + $0x24] sm:$0xf]
  %v88 = vld [vmem:[%s1 + $0x28] sm:$0xf]
  %v89 = vld [vmem:[%s1 + $0x2c] sm:$0xf]
  %v90 = vld [vmem:[%s1 + $0x30] sm:$0xf]
  %v91 = vld [vmem:[%s1 + $0x34] sm:$0xf]
  %v92 = vld [vmem:[%s1 + $0x38] sm:$0xf]
  %v93 = vld [vmem:[%s1 + $0x3c] sm:$0xf]
  %v110 = vunpack.c.l.b16 %v78
  %v111 = vunpack.c.l.b16 %v79
  %v112 = vunpack.c.l.b16 %v80
  %v113 = vunpack.c.l.b16 %v81
  %v114 = vunpack.c.l.b16 %v82
  %v115 = vunpack.c.l.b16 %v83
  %v116 = vunpack.c.l.b16 %v84
  %v117 = vunpack.c.l.b16 %v85
  %v118 = vunpack.c.l.b16 %v86
  %v119 = vunpack.c.l.b16 %v87
  %v120 = vunpack.c.l.b16 %v88
  %v121 = vunpack.c.l.b16 %v89
  %v122 = vunpack.c.l.b16 %v90
  %v123 = vunpack.c.l.b16 %v91
  %v124 = vunpack.c.l.b16 %v92
  %v125 = vunpack.c.l.b16 %v93
  %v126 = vpack.c.b16 %v111, %v110
  %v127 = vpack.c.b16 %v113, %v112
  %v128 = vpack.c.b16 %v115, %v114
  %v129 = vpack.c.b16 %v117, %v116
  %v130 = vpack.c.b16 %v119, %v118
  %v131 = vpack.c.b16 %v121, %v120
  %v132 = vpack.c.b16 %v123, %v122
  %v133 = vpack.c.b16 %v125, %v124
  %142 = vmatprep.subr.bf16.mxu0 0
  %143 = vmatpush1.bf16.msra.mxu0 %v126
  %144 = vmatprep.subr.bf16.mxu0 0
  %145 = vmatpush1.bf16.msra.mxu0 %v127
  %146 = vmatprep.subr.bf16.mxu0 0
  %147 = vmatpush1.bf16.msra.mxu0 %v128
  %148 = vmatprep.subr.bf16.mxu0 0
  %149 = vmatpush1.bf16.msra.mxu0 %v129
  %150 = vmatprep.subr.bf16.mxu0 0
  %151 = vmatpush1.bf16.msra.mxu0 %v130
  %152 = vmatprep.subr.bf16.mxu0 0
  %153 = vmatpush1.bf16.msra.mxu0 %v131
  %154 = vmatprep.subr.bf16.mxu0 0
  %155 = vmatpush1.bf16.msra.mxu0 %v132
  %156 = vmatprep.subr.bf16.mxu0 0
  %157 = vmatpush1.bf16.msra.mxu0 %v133
  %158 = vmatprep.subr.bf16.mxu0 0
  %159 = vmatpush1.bf16.msra.mxu0 0
  %160 = vmatprep.subr.bf16.mxu0 0
  %161 = vmatpush1.bf16.msra.mxu0 0
  %162 = vmatprep.subr.bf16.mxu0 0
  %163 = vmatpush1.bf16.msra.mxu0 0
  %164 = vmatprep.subr.bf16.mxu0 0
  %165 = vmatpush1.bf16.msra.mxu0 0
  %166 = vmatprep.subr.bf16.mxu0 0
  %167 = vmatpush1.bf16.msra.mxu0 0
  %168 = vmatprep.subr.bf16.mxu0 0
  %169 = vmatpush1.bf16.msra.mxu0 0
  %170 = vmatprep.subr.bf16.mxu0 0
  %171 = vmatpush1.bf16.msra.mxu0 0
  %172 = vmatprep.subr.bf16.mxu0 0
  %173 = vmatpush1.bf16.msra.mxu0 0
  %174 = vmatprep.mubr.bf16.mxu0 0
  %175 = vmatmul.mubr.bf16.gmra.mrb[0].mxu0 %v70
  %v176 = vpop.f32.mrb[0].mxu0
  %v177 = vadd.f32 0.0, %v176
  %v178 = vpop.f32.mrb[0].mxu0
  %v179 = vpop.f32.mrb[0].mxu0
  %v180 = vadd.f32 0.0, %v179
  %v181 = vpop.f32.mrb[0].mxu0
  %182 = vmatprep.mubr.bf16.mxu0 0
  %183 = vmatmul.mubr.bf16.gmra.mrb[0].mxu0 %v71
  %v184 = vpop.f32.mrb[0].mxu0
  %v185 = vadd.f32 0.0, %v184
  %v186 = vpop.f32.mrb[0].mxu0
  %v187 = vpop.f32.mrb[0].mxu0
  %v188 = vadd.f32 0.0, %v187
  %v189 = vpop.f32.mrb[0].mxu0
  %190 = vmatprep.mubr.bf16.mxu0 0
  %191 = vmatmul.mubr.bf16.gmra.mrb[0].mxu0 %v72
  %v192 = vpop.f32.mrb[0].mxu0
  %v193 = vadd.f32 0.0, %v192
  %v194 = vpop.f32.mrb[0].mxu0
  %v195 = vpop.f32.mrb[0].mxu0
  %v196 = vadd.f32 0.0, %v195
  %v197 = vpop.f32.mrb[0].mxu0
  %198 = vmatprep.mubr.bf16.mxu0 0
  %199 = vmatmul.mubr.bf16.gmra.mrb[0].mxu0 %v73
  %v200 = vpop.f32.mrb[0].mxu0
  %v201 = vadd.f32 0.0, %v200
  %v202 = vpop.f32.mrb[0].mxu0
  %v203 = vpop.f32.mrb[0].mxu0
  %v204 = vadd.f32 0.0, %v203
  %v205 = vpop.f32.mrb[0].mxu0
  %206 = vmatprep.mubr.bf16.mxu0 0
  %207 = vmatmul.mubr.bf16.gmra.mrb[0].mxu0 %v74
  %v208 = vpop.f32.mrb[0].mxu0
  %v209 = vadd.f32 0.0, %v208
  %v210 = vpop.f32.mrb[0].mxu0
  %v211 = vpop.f32.mrb[0].mxu0
  %v212 = vadd.f32 0.0, %v211
  %v213 = vpop.f32.mrb[0].mxu0
  %214 = vmatprep.mubr.bf16.mxu0 0
  %215 = vmatmul.mubr.bf16.gmra.mrb[0].mxu0 %v75
  %v216 = vpop.f32.mrb[0].mxu0
  %v217 = vadd.f32 0.0, %v216
  %v218 = vpop.f32.mrb[0].mxu0
  %v219 = vpop.f32.mrb[0].mxu0
  %v220 = vadd.f32 0.0, %v219
  %v221 = vpop.f32.mrb[0].mxu0
  %222 = vmatprep.mubr.bf16.mxu0 0
  %223 = vmatmul.mubr.bf16.gmra.mrb[0].mxu0 %v76
  %v224 = vpop.f32.mrb[0].mxu0
  %v225 = vadd.f32 0.0, %v224
  %v226 = vpop.f32.mrb[0].mxu0
  %v227 = vpop.f32.mrb[0].mxu0
  %v228 = vadd.f32 0.0, %v227
  %v229 = vpop.f32.mrb[0].mxu0
  %230 = vmatprep.mubr.bf16.mxu0 0
  %231 = vmatmul.mubr.bf16.gmra.mrb[0].mxu0 %v77
  %v232 = vpop.f32.mrb[0].mxu0
  %v233 = vadd.f32 0.0, %v232
  %v234 = vpop.f32.mrb[0].mxu0
  %v235 = vpop.f32.mrb[0].mxu0
  %v236 = vadd.f32 0.0, %v235
  %v237 = vpop.f32.mrb[0].mxu0
  %238 = vdwg.mxu0
  %v239 = vadd.f32 %v38, %v177
  %v240 = vadd.f32 %v39, %v180
  %v241 = vadd.f32 %v40, %v185
  %v242 = vadd.f32 %v41, %v188
  %v243 = vadd.f32 %v42, %v193
  %v244 = vadd.f32 %v43, %v196
  %v245 = vadd.f32 %v44, %v201
  %v246 = vadd.f32 %v45, %v204
  %v247 = vadd.f32 %v46, %v209
  %v248 = vadd.f32 %v47, %v212
  %v249 = vadd.f32 %v48, %v217
  %v250 = vadd.f32 %v49, %v220
  %v251 = vadd.f32 %v50, %v225
  %v252 = vadd.f32 %v51, %v228
  %v253 = vadd.f32 %v52, %v233
  %v254 = vadd.f32 %v53, %v236
  %255 = vst [vmem:[#allocation2] sm:$0xff] %v239
  %256 = vst [vmem:[#allocation2 + $0x8] sm:$0xff] %v240
  %257 = vst [vmem:[#allocation2 + $0x10] sm:$0xff] %v241
  %258 = vst [vmem:[#allocation2 + $0x18] sm:$0xff] %v242
  %259 = vst [vmem:[#allocation2 + $0x20] sm:$0xff] %v243
  %260 = vst [vmem:[#allocation2 + $0x28] sm:$0xff] %v244
  %261 = vst [vmem:[#allocation2 + $0x30] sm:$0xff] %v245
  %262 = vst [vmem:[#allocation2 + $0x38] sm:$0xff] %v246
  %263 = vst [vmem:[#allocation2 + $0x40] sm:$0xff] %v247
  %264 = vst [vmem:[#allocation2 + $0x48] sm:$0xff] %v248
  %265 = vst [vmem:[#allocation2 + $0x50] sm:$0xff] %v249
  %266 = vst [vmem:[#allocation2 + $0x58] sm:$0xff] %v250
  %267 = vst [vmem:[#allocation2 + $0x60] sm:$0xff] %v251
  %268 = vst [vmem:[#allocation2 + $0x68] sm:$0xff] %v252
  %269 = vst [vmem:[#allocation2 + $0x70] sm:$0xff] %v253
  %270 = vst [vmem:[#allocation2 + $0x78] sm:$0xff] %v254
  // Predicated region
  $region22: #{graph_autoencoder_forward.5} parent=0 // pred_check
    %p271 = pneg %p18
  $region23: #{graph_autoencoder_forward.5} parent=0 // pred_check_branch
    %273 = sbr.rel (%p271) target = $region25
  $region24: #{graph_autoencoder_forward.5} parent=0 // pred_region
    %v274 = vld [vmem:[#allocation2] sm:$0xff]
    %v275 = vld [vmem:[#allocation2 + $0x8] sm:$0xff]
    %v276 = vld [vmem:[#allocation2 + $0x10] sm:$0xff]
    %v277 = vld [vmem:[#allocation2 + $0x18] sm:$0xff]
    %v278 = vld [vmem:[#allocation2 + $0x20] sm:$0xff]
    %v279 = vld [vmem:[#allocation2 + $0x28] sm:$0xff]
    %v280 = vld [vmem:[#allocation2 + $0x30] sm:$0xff]
    %v281 = vld [vmem:[#allocation2 + $0x38] sm:$0xff]
    %v282 = vld [vmem:[#allocation2 + $0x40] sm:$0xff]
    %v283 = vld [vmem:[#allocation2 + $0x48] sm:$0xff]
    %v284 = vld [vmem:[#allocation2 + $0x50] sm:$0xff]
    %v285 = vld [vmem:[#allocation2 + $0x58] sm:$0xff]
    %v286 = vld [vmem:[#allocation2 + $0x60] sm:$0xff]
    %v287 = vld [vmem:[#allocation2 + $0x68] sm:$0xff]
    %v288 = vld [vmem:[#allocation2 + $0x70] sm:$0xff]
    %v289 = vld [vmem:[#allocation2 + $0x78] sm:$0xff]
    %v290 = vld [vmem:[%s2] sm:$0x1]
    %v292 = vlaneseq
    %v293 = vshrl.u32 %v292, 7
    %v294 = vsub.s32 0, %v293
    %v295 = vrot.slane %v290, %v294
    %v297 = vadd.f32 %v274, %v295
    %v298 = vadd.f32 %v275, %v295
    %v299 = vadd.f32 %v276, %v295
    %v300 = vadd.f32 %v277, %v295
    %v301 = vadd.f32 %v278, %v295
    %v302 = vadd.f32 %v279, %v295
    %v303 = vadd.f32 %v280, %v295
    %v304 = vadd.f32 %v281, %v295
    %v305 = vadd.f32 %v282, %v295
    %v306 = vadd.f32 %v283, %v295
    %v307 = vadd.f32 %v284, %v295
    %v308 = vadd.f32 %v285, %v295
    %v309 = vadd.f32 %v286, %v295
    %v310 = vadd.f32 %v287, %v295
    %v311 = vadd.f32 %v288, %v295
    %v312 = vadd.f32 %v289, %v295
    %v313 = vmax.f32 %v297, 0.0
    %v314 = vmax.f32 %v298, 0.0
    %v315 = vmax.f32 %v299, 0.0
    %v316 = vmax.f32 %v300, 0.0
    %v317 = vmax.f32 %v301, 0.0
    %v318 = vmax.f32 %v302, 0.0
    %v319 = vmax.f32 %v303, 0.0
    %v320 = vmax.f32 %v304, 0.0
    %v321 = vmax.f32 %v305, 0.0
    %v322 = vmax.f32 %v306, 0.0
    %v323 = vmax.f32 %v307, 0.0
    %v324 = vmax.f32 %v308, 0.0
    %v325 = vmax.f32 %v309, 0.0
    %v326 = vmax.f32 %v310, 0.0
    %v327 = vmax.f32 %v311, 0.0
    %v328 = vmax.f32 %v312, 0.0
    %v329 = vpack.c.bf16 %v314, %v313
    %v330 = vpack.c.bf16 %v316, %v315
    %v331 = vpack.c.bf16 %v318, %v317
    %v332 = vpack.c.bf16 %v320, %v319
    %v333 = vpack.c.bf16 %v322, %v321
    %v334 = vpack.c.bf16 %v324, %v323
    %v335 = vpack.c.bf16 %v326, %v325
    %v336 = vpack.c.bf16 %v328, %v327
    %v337 = vld [vmem:[%s3] sm:$0xf]
    %v338 = vld [vmem:[%s3 + $0x4] sm:$0xf]
    %v339 = vld [vmem:[%s3 + $0x8] sm:$0xf]
    %v340 = vld [vmem:[%s3 + $0xc] sm:$0xf]
    %v341 = vld [vmem:[%s3 + $0x10] sm:$0xf]
    %v342 = vld [vmem:[%s3 + $0x14] sm:$0xf]
    %v343 = vld [vmem:[%s3 + $0x18] sm:$0xf]
    %v344 = vld [vmem:[%s3 + $0x1c] sm:$0xf]
    %v345 = vld [vmem:[%s3 + $0x20] sm:$0xf]
    %v346 = vld [vmem:[%s3 + $0x24] sm:$0xf]
    %v347 = vld [vmem:[%s3 + $0x28] sm:$0xf]
    %v348 = vld [vmem:[%s3 + $0x2c] sm:$0xf]
    %v349 = vld [vmem:[%s3 + $0x30] sm:$0xf]
    %v350 = vld [vmem:[%s3 + $0x34] sm:$0xf]
    %v351 = vld [vmem:[%s3 + $0x38] sm:$0xf]
    %v352 = vld [vmem:[%s3 + $0x3c] sm:$0xf]
    %v369 = vunpack.c.l.b16 %v337
    %v370 = vunpack.c.l.b16 %v338
    %v371 = vunpack.c.l.b16 %v339
    %v372 = vunpack.c.l.b16 %v340
    %v373 = vunpack.c.l.b16 %v341
    %v374 = vunpack.c.l.b16 %v342
    %v375 = vunpack.c.l.b16 %v343
    %v376 = vunpack.c.l.b16 %v344
    %v377 = vunpack.c.l.b16 %v345
    %v378 = vunpack.c.l.b16 %v346
    %v379 = vunpack.c.l.b16 %v347
    %v380 = vunpack.c.l.b16 %v348
    %v381 = vunpack.c.l.b16 %v349
    %v382 = vunpack.c.l.b16 %v350
    %v383 = vunpack.c.l.b16 %v351
    %v384 = vunpack.c.l.b16 %v352
    %v385 = vpack.c.b16 %v370, %v369
    %v386 = vpack.c.b16 %v372, %v371
    %v387 = vpack.c.b16 %v374, %v373
    %v388 = vpack.c.b16 %v376, %v375
    %v389 = vpack.c.b16 %v378, %v377
    %v390 = vpack.c.b16 %v380, %v379
    %v391 = vpack.c.b16 %v382, %v381
    %v392 = vpack.c.b16 %v384, %v383
    %401 = vmatprep.subr.bf16.mxu0 0
    %402 = vmatpush1.bf16.msra.mxu0 %v385
    %403 = vmatprep.subr.bf16.mxu0 0
    %404 = vmatpush1.bf16.msra.mxu0 %v386
    %405 = vmatprep.subr.bf16.mxu0 0
    %406 = vmatpush1.bf16.msra.mxu0 %v387
    %407 = vmatprep.subr.bf16.mxu0 0
    %408 = vmatpush1.bf16.msra.mxu0 %v388
    %409 = vmatprep.subr.bf16.mxu0 0
    %410 = vmatpush1.bf16.msra.mxu0 %v389
    %411 = vmatprep.subr.bf16.mxu0 0
    %412 = vmatpush1.bf16.msra.mxu0 %v390
    %413 = vmatprep.subr.bf16.mxu0 0
    %414 = vmatpush1.bf16.msra.mxu0 %v391
    %415 = vmatprep.subr.bf16.mxu0 0
    %416 = vmatpush1.bf16.msra.mxu0 %v392
    %417 = vmatprep.subr.bf16.mxu0 0
    %418 = vmatpush1.bf16.msra.mxu0 0
    %419 = vmatprep.subr.bf16.mxu0 0
    %420 = vmatpush1.bf16.msra.mxu0 0
    %421 = vmatprep.subr.bf16.mxu0 0
    %422 = vmatpush1.bf16.msra.mxu0 0
    %423 = vmatprep.subr.bf16.mxu0 0
    %424 = vmatpush1.bf16.msra.mxu0 0
    %425 = vmatprep.subr.bf16.mxu0 0
    %426 = vmatpush1.bf16.msra.mxu0 0
    %427 = vmatprep.subr.bf16.mxu0 0
    %428 = vmatpush1.bf16.msra.mxu0 0
    %429 = vmatprep.subr.bf16.mxu0 0
    %430 = vmatpush1.bf16.msra.mxu0 0
    %431 = vmatprep.subr.bf16.mxu0 0
    %432 = vmatpush1.bf16.msra.mxu0 0
    %433 = vmatprep.mubr.bf16.mxu0 0
    %434 = vmatmul.mubr.bf16.gmra.mrb[0].mxu0 %v329
    %v435 = vpop.f32.mrb[0].mxu0
    %v436 = vadd.f32 0.0, %v435
    %v437 = vpop.f32.mrb[0].mxu0
    %v438 = vpop.f32.mrb[0].mxu0
    %v439 = vadd.f32 0.0, %v438
    %v440 = vpop.f32.mrb[0].mxu0
    %441 = vmatprep.mubr.bf16.mxu0 0
    %442 = vmatmul.mubr.bf16.gmra.mrb[0].mxu0 %v330
    %v443 = vpop.f32.mrb[0].mxu0
    %v444 = vadd.f32 0.0, %v443
    %v445 = vpop.f32.mrb[0].mxu0
    %v446 = vpop.f32.mrb[0].mxu0
    %v447 = vadd.f32 0.0, %v446
    %v448 = vpop.f32.mrb[0].mxu0
    %449 = vmatprep.mubr.bf16.mxu0 0
    %450 = vmatmul.mubr.bf16.gmra.mrb[0].mxu0 %v331
    %v451 = vpop.f32.mrb[0].mxu0
    %v452 = vadd.f32 0.0, %v451
    %v453 = vpop.f32.mrb[0].mxu0
    %v454 = vpop.f32.mrb[0].mxu0
    %v455 = vadd.f32 0.0, %v454
    %v456 = vpop.f32.mrb[0].mxu0
    %457 = vmatprep.mubr.bf16.mxu0 0
    %458 = vmatmul.mubr.bf16.gmra.mrb[0].mxu0 %v332
    %v459 = vpop.f32.mrb[0].mxu0
    %v460 = vadd.f32 0.0, %v459
    %v461 = vpop.f32.mrb[0].mxu0
    %v462 = vpop.f32.mrb[0].mxu0
    %v463 = vadd.f32 0.0, %v462
    %v464 = vpop.f32.mrb[0].mxu0
    %465 = vmatprep.mubr.bf16.mxu0 0
    %466 = vmatmul.mubr.bf16.gmra.mrb[0].mxu0 %v333
    %v467 = vpop.f32.mrb[0].mxu0
    %v468 = vadd.f32 0.0, %v467
    %v469 = vpop.f32.mrb[0].mxu0
    %v470 = vpop.f32.mrb[0].mxu0
    %v471 = vadd.f32 0.0, %v470
    %v472 = vpop.f32.mrb[0].mxu0
    %473 = vmatprep.mubr.bf16.mxu0 0
    %474 = vmatmul.mubr.bf16.gmra.mrb[0].mxu0 %v334
    %v475 = vpop.f32.mrb[0].mxu0
    %v476 = vadd.f32 0.0, %v475
    %v477 = vpop.f32.mrb[0].mxu0
    %v478 = vpop.f32.mrb[0].mxu0
    %v479 = vadd.f32 0.0, %v478
    %v480 = vpop.f32.mrb[0].mxu0
    %481 = vmatprep.mubr.bf16.mxu0 0
    %482 = vmatmul.mubr.bf16.gmra.mrb[0].mxu0 %v335
    %v483 = vpop.f32.mrb[0].mxu0
    %v484 = vadd.f32 0.0, %v483
    %v485 = vpop.f32.mrb[0].mxu0
    %v486 = vpop.f32.mrb[0].mxu0
    %v487 = vadd.f32 0.0, %v486
    %v488 = vpop.f32.mrb[0].mxu0
    %489 = vmatprep.mubr.bf16.mxu0 0
    %490 = vmatmul.mubr.bf16.gmra.mrb[0].mxu0 %v336
    %v491 = vpop.f32.mrb[0].mxu0
    %v492 = vadd.f32 0.0, %v491
    %v493 = vpop.f32.mrb[0].mxu0
    %v494 = vpop.f32.mrb[0].mxu0
    %v495 = vadd.f32 0.0, %v494
    %v496 = vpop.f32.mrb[0].mxu0
    %497 = vdwg.mxu0
    %v498 = vpack.c.bf16 %v439, %v436
    %v499 = vpack.c.bf16 %v447, %v444
    %v500 = vpack.c.bf16 %v455, %v452
    %v501 = vpack.c.bf16 %v463, %v460
    %v502 = vpack.c.bf16 %v471, %v468
    %v503 = vpack.c.bf16 %v479, %v476
    %v504 = vpack.c.bf16 %v487, %v484
    %v505 = vpack.c.bf16 %v495, %v492
    %v514 = vunpack.c.l.b16 %v498
    %v515 = vunpack.c.h.b16 %v498
    %v516 = vunpack.c.l.b16 %v499
    %v517 = vunpack.c.h.b16 %v499
    %v518 = vunpack.c.l.b16 %v500
    %v519 = vunpack.c.h.b16 %v500
    %v520 = vunpack.c.l.b16 %v501
    %v521 = vunpack.c.h.b16 %v501
    %v522 = vunpack.c.l.b16 %v502
    %v523 = vunpack.c.h.b16 %v502
    %v524 = vunpack.c.l.b16 %v503
    %v525 = vunpack.c.h.b16 %v503
    %v526 = vunpack.c.l.b16 %v504
    %v527 = vunpack.c.h.b16 %v504
    %v528 = vunpack.c.l.b16 %v505
    %v529 = vunpack.c.h.b16 %v505
    %v530 = vpack.c.b16 %v514, %v514
    %v531 = vpack.c.b16 %v515, %v515
    %v532 = vpack.c.b16 %v516, %v516
    %v533 = vpack.c.b16 %v517, %v517
    %v534 = vpack.c.b16 %v518, %v518
    %v535 = vpack.c.b16 %v519, %v519
    %v536 = vpack.c.b16 %v520, %v520
    %v537 = vpack.c.b16 %v521, %v521
    %v538 = vpack.c.b16 %v522, %v522
    %v539 = vpack.c.b16 %v523, %v523
    %v540 = vpack.c.b16 %v524, %v524
    %v541 = vpack.c.b16 %v525, %v525
    %v542 = vpack.c.b16 %v526, %v526
    %v543 = vpack.c.b16 %v527, %v527
    %v544 = vpack.c.b16 %v528, %v528
    %v545 = vpack.c.b16 %v529, %v529
    %562 = vst [vmem:[%s4] sm:$0xf] %v530
    %563 = vst [vmem:[%s4 + $0x4] sm:$0xf] %v531
    %564 = vst [vmem:[%s4 + $0x8] sm:$0xf] %v532
    %565 = vst [vmem:[%s4 + $0xc] sm:$0xf] %v533
    %566 = vst [vmem:[%s4 + $0x10] sm:$0xf] %v534
    %567 = vst [vmem:[%s4 + $0x14] sm:$0xf] %v535
    %568 = vst [vmem:[%s4 + $0x18] sm:$0xf] %v536
    %569 = vst [vmem:[%s4 + $0x1c] sm:$0xf] %v537
    %570 = vst [vmem:[%s4 + $0x20] sm:$0xf] %v538
    %571 = vst [vmem:[%s4 + $0x24] sm:$0xf] %v539
    %572 = vst [vmem:[%s4 + $0x28] sm:$0xf] %v540
    %573 = vst [vmem:[%s4 + $0x2c] sm:$0xf] %v541
    %574 = vst [vmem:[%s4 + $0x30] sm:$0xf] %v542
    %575 = vst [vmem:[%s4 + $0x34] sm:$0xf] %v543
    %576 = vst [vmem:[%s4 + $0x38] sm:$0xf] %v544
    %577 = vst [vmem:[%s4 + $0x3c] sm:$0xf] %v545
  $region25: #{graph_autoencoder_forward.5} parent=0 // pred_fallthru
    _
  // Predicated region
  $region26: #{graph_autoencoder_forward.5} parent=0 // pred_check
    _
  $region27: #{graph_autoencoder_forward.5} parent=0 // pred_check_branch
    %579 = sbr.rel (0) target = $region29
  $region28: #{graph_autoencoder_forward.5} parent=0 // pred_region
    _
  $region29: #{graph_autoencoder_forward.5} parent=0 // pred_fallthru
    _
  // Predicated region
  $region30: #{graph_autoencoder_forward.5} parent=0 // pred_check
    _
  $region31: #{graph_autoencoder_forward.5} parent=0 // pred_check_branch
    %581 = sbr.rel (0) target = $region33
  $region32: #{graph_autoencoder_forward.5} parent=0 // pred_region
    _
  $region33: #{graph_autoencoder_forward.5} parent=0 // pred_fallthru
    _

</llo_original>
